<compile_context>
chip_gen: v7x
topology: tpu7x:2x2x1
jax: 0.10.0
libtpu: 0.0.40
codegen_flags: <defaults>
</compile_context>

<pallas_src>
import jax
import jax.numpy as jnp
from jax import lax
from jax.experimental import pallas as pl
from jax.experimental.pallas import tpu as pltpu

BN_EPS = 1e-5


def _bottleneck_kernel(x_ref, xt_ref, xb_ref,
                       w1_ref, s1_ref, b1_ref,
                       w2_ref, s2_ref, b2_ref,
                       w3_ref, s3_ref, b3_ref,
                       o_ref):
    # x_ref : (1, TH, W, Cin)  main row band
    # xt_ref: (1, 1,  W, Cin)  row above the band (clamped at the top border)
    # xb_ref: (1, 1,  W, Cin)  row below the band (clamped at the bottom border)
    _, TH, W, Cin = x_ref.shape
    P = w1_ref.shape[1]
    Cout = w3_ref.shape[1]
    M = (TH + 2) * W                         # flattened (band_row, w) spatial dim

    r = pl.program_id(1)
    nr = pl.num_programs(1)

    # ---- conv1 (1x1) + bn1 + relu over the haloed band (flat spatial) ------
    x_band = jnp.concatenate(
        [xt_ref[0].reshape(W, Cin),
         x_ref[0].reshape(TH * W, Cin),
         xb_ref[0].reshape(W, Cin)], axis=0)                     # (M, Cin)
    y1 = jnp.dot(x_band.astype(w1_ref.dtype), w1_ref[...],
                 preferred_element_type=jnp.float32)             # (M, P) f32 acc
    y1 = jnp.maximum(y1 * s1_ref[...] + b1_ref[...], 0.0)

    # Flat spatial index / column index (sublane iota, computed once).
    m_idx = lax.broadcasted_iota(jnp.int32, (M, 1), 0)
    col = m_idx % W

    # Zero the halo rows that correspond to conv2's zero padding at the
    # true image borders (first / last row tile only).
    pad_row = jnp.logical_or(jnp.logical_and(r == 0, m_idx < W),
                             jnp.logical_and(r == nr - 1, m_idx >= M - W))
    y1 = jnp.where(pad_row, 0.0, y1)

    # ---- conv2 (3x3 depthwise, pad=1, stride=1) + bn2 + relu ----------------
    # W-neighbour views via circular sublane rolls of the flat band; any
    # row-crossing / wrap-around value lands only in a masked column.
    left = jnp.where(col == 0, 0.0, pltpu.roll(y1, 1, 0))          # value at w-1
    right = jnp.where(col == W - 1, 0.0, pltpu.roll(y1, M - 1, 0))  # value at w+1

    w2 = w2_ref[...]                                               # (9, P) hoisted
    acc = jnp.zeros((TH * W, P), jnp.float32)
    for dh in range(3):                                            # aligned major-
        s0 = dh * W                                                # dim slices
        acc = (acc
               + lax.slice_in_dim(left, s0, s0 + TH * W, axis=0) * w2[3 * dh + 0]
               + lax.slice_in_dim(y1, s0, s0 + TH * W, axis=0) * w2[3 * dh + 1]
               + lax.slice_in_dim(right, s0, s0 + TH * W, axis=0) * w2[3 * dh + 2])
    y2 = jnp.maximum(acc * s2_ref[...] + b2_ref[...], 0.0)         # (TH*W, P)

    # ---- conv3 (1x1) + bn3 --------------------------------------------------
    y3 = jnp.dot(y2.astype(w3_ref.dtype), w3_ref[...],
                 preferred_element_type=jnp.float32)               # (TH*W, Cout)
    y3 = y3 * s3_ref[...] + b3_ref[...]

    # ---- residual add + relu (re-read x from the resident VMEM block) ------
    res = x_ref[0].reshape(TH * W, Cin).astype(jnp.float32)
    out = jnp.maximum(y3 + res, 0.0)
    o_ref[0] = out.reshape(TH, W, Cout).astype(o_ref.dtype)


# Leave headroom under v7x's 64 MiB physical VMEM (v5e/v6e have 128 MiB).
_VMEM_LIMIT_BYTES = 48 * 1024 * 1024


def _vmem_bytes_estimate(TH, W, Cin, P, Cout):
    f32, bf16 = 4, 2
    # double-buffered pipeline blocks (input band + 2 halo rows + output band)
    io = 2 * (TH * W * Cin + 2 * W * Cin + TH * W * Cout) * f32
    wts = 2 * (Cin * P * bf16 + P * Cout * bf16 + (9 + 4) * P * f32 + 2 * Cout * f32)
    # in-kernel live values (y1 / left / right band, acc / y2, bf16 copies)
    live = ((TH + 2) * W * (Cin + 3 * P) + TH * W * (2 * P + 2 * Cout)) * f32
    return io + wts + live


def _pick_row_block(H, W, Cin, P, Cout):
    budget = _VMEM_LIMIT_BYTES // 2
    for th in range(min(H, 128), 0, -1):
        if H % th == 0 and _vmem_bytes_estimate(th, W, Cin, P, Cout) <= budget:
            return th
    return 1


def bottleneck_dwp_forward_nhwc(x, params, row_block=None):
    """x: (N, H, W, Cin) float32 NHWC; params: folded weights from make_params."""
    N, H, W, Cin = x.shape
    w1 = params["w1"].astype(jnp.bfloat16)      # (Cin, P)   MXU operand (bf16)
    w3 = params["w3"].astype(jnp.bfloat16)      # (P, Cout)  MXU operand (bf16)
    w2 = params["w2"].astype(jnp.float32)       # (9, P)     depthwise taps (VPU)
    s1, b1 = params["s1"], params["b1"]
    s2, b2 = params["s2"], params["b2"]
    s3, b3 = params["s3"], params["b3"]
    P = w1.shape[1]
    Cout = w3.shape[1]
    assert Cout == Cin, "identity residual requires inplanes == planes * expansion"

    TH = row_block if row_block is not None else _pick_row_block(H, W, Cin, P, Cout)
    assert H % TH == 0, f"row_block={TH} must divide H={H}"

    def full(a):
        return pl.BlockSpec(a.shape, lambda b, r: (0,) * a.ndim)

    out = pl.pallas_call(
        _bottleneck_kernel,
        out_shape=jax.ShapeDtypeStruct((N, H, W, Cout), x.dtype),
        grid_spec=pltpu.PrefetchScalarGridSpec(
            num_scalar_prefetch=0,
            grid=(N, H // TH),
            in_specs=[
                # main row band: rows [r*TH, (r+1)*TH)
                pl.BlockSpec((1, TH, W, Cin), lambda b, r: (b, r, 0, 0)),
                # 1-row halos above / below, clamped at the image borders;
                # the kernel zero-masks them where they are true padding.
                pl.BlockSpec((1, 1, W, Cin),
                             lambda b, r: (b, jnp.maximum(r * TH - 1, 0), 0, 0)),
                pl.BlockSpec((1, 1, W, Cin),
                             lambda b, r: (b, jnp.minimum(r * TH + TH, H - 1), 0, 0)),
                full(w1), full(s1), full(b1),
                full(w2), full(s2), full(b2),
                full(w3), full(s3), full(b3),
            ],
            out_specs=pl.BlockSpec((1, TH, W, Cout), lambda b, r: (b, r, 0, 0)),
        ),
        compiler_params=pltpu.CompilerParams(
            dimension_semantics=("parallel", "parallel"),
            vmem_limit_bytes=_VMEM_LIMIT_BYTES),
    )(x, x, x, w1, s1, b1, w2, s2, b2, w3, s3, b3)
    return out


def bottleneck_dwp_forward(x_nchw, params, row_block=None):
    # NCHW adapter for the PyTorch-layout caller.  In a full network keep
    # activations NHWC and call bottleneck_dwp_forward_nhwc directly so these
    # two HBM round-trip transposes disappear.
    x = jnp.transpose(x_nchw, (0, 2, 3, 1))
    y = bottleneck_dwp_forward_nhwc(x, params, row_block=row_block)
    return jnp.transpose(y, (0, 3, 1, 2))


# ----------------------------------------------------------------------
# Deterministic parameter construction + pure-JAX reference for checking
# ----------------------------------------------------------------------
def make_params(key, inplanes, planes, expansion=4):
    Cout = planes * expansion
    ks = jax.random.split(key, 16)

    def bn_fold(kg, kb, km, kv, C):
        gamma = jax.random.uniform(kg, (C,), minval=0.5, maxval=1.5)
        beta = 0.1 * jax.random.normal(kb, (C,))
        mean = 0.1 * jax.random.normal(km, (C,))
        var = jax.random.uniform(kv, (C,), minval=0.5, maxval=1.5)
        scale = gamma / jnp.sqrt(var + BN_EPS)
        bias = beta - mean * scale
        return scale, bias, (gamma, beta, mean, var)

    # conv weights (PyTorch shapes), then reshape for the kernel
    w1_t = 0.1 * jax.random.normal(ks[0], (planes, inplanes, 1, 1))      # OIHW
    w2_t = 0.1 * jax.random.normal(ks[1], (planes, 1, 3, 3))             # depthwise
    w3_t = 0.1 * jax.random.normal(ks[2], (Cout, planes, 1, 1))

    s1, b1, bn1 = bn_fold(ks[3], ks[4], ks[5], ks[6], planes)
    s2, b2, bn2 = bn_fold(ks[7], ks[8], ks[9], ks[10], planes)
    s3, b3, bn3 = bn_fold(ks[11], ks[12], ks[13], ks[14], Cout)

    params = {
        "w1": jnp.transpose(w1_t[:, :, 0, 0], (1, 0)),               # (Cin, P)
        "w2": jnp.transpose(w2_t[:, 0].reshape(planes, 9), (1, 0)),  # (9, P)
        "w3": jnp.transpose(w3_t[:, :, 0, 0], (1, 0)),               # (P, Cout)
        "s1": s1.reshape(1, -1), "b1": b1.reshape(1, -1),
        "s2": s2.reshape(1, -1), "b2": b2.reshape(1, -1),
        "s3": s3.reshape(1, -1), "b3": b3.reshape(1, -1),
    }
    raw = {"w1": w1_t, "w2": w2_t, "w3": w3_t,
           "bn1": bn1, "bn2": bn2, "bn3": bn3}
    return params, raw


def reference_forward(x_nchw, raw, planes, expansion=4):
    """Pure-JAX (lax.conv) reference, NHWC internally, eval-mode BN, f32."""
    x = jnp.transpose(x_nchw, (0, 2, 3, 1))

    def bn(y, stats):
        gamma, beta, mean, var = stats
        return (y - mean) / jnp.sqrt(var + BN_EPS) * gamma + beta

    dn = ("NHWC", "HWIO", "NHWC")
    w1 = jnp.transpose(raw["w1"], (2, 3, 1, 0))              # (1,1,Cin,P)
    w2 = jnp.transpose(raw["w2"], (2, 3, 1, 0))              # (3,3,1,P)
    w3 = jnp.transpose(raw["w3"], (2, 3, 1, 0))              # (1,1,P,Cout)

    y = lax.conv_general_dilated(x, w1, (1, 1), "VALID", dimension_numbers=dn)
    y = jnp.maximum(bn(y, raw["bn1"]), 0.0)
    y = lax.conv_general_dilated(y, w2, (1, 1), [(1, 1), (1, 1)],
                                 dimension_numbers=dn,
                                 feature_group_count=planes)
    y = jnp.maximum(bn(y, raw["bn2"]), 0.0)
    y = lax.conv_general_dilated(y, w3, (1, 1), "VALID", dimension_numbers=dn)
    y = bn(y, raw["bn3"])
    y = jnp.maximum(y + x, 0.0)
    return jnp.transpose(y, (0, 3, 1, 2))


if __name__ == "__main__":
    key = jax.random.PRNGKey(0)
    kx, kp = jax.random.split(key)

    # Small shapes consistent with the module: inplanes = planes * expansion.
    N, planes, expansion = 2, 4, 4
    inplanes = planes * expansion            # 16 -> identity residual path
    H = W = 16

    x = jax.random.normal(kx, (N, inplanes, H, W), dtype=jnp.float32)
    params, raw = make_params(kp, inplanes, planes, expansion)

    # row_block=4 -> 4 row tiles per image: exercises the top/bottom border
    # tiles and the interior halo-row tiles of the spatially tiled kernel.
    out = bottleneck_dwp_forward(x, params, row_block=4)
    out = jax.block_until_ready(out)

    ref = reference_forward(x, raw, planes, expansion)
    assert out.shape == (N, inplanes, H, W)
    max_err = float(jnp.max(jnp.abs(out - ref)))
    mean_err = float(jnp.mean(jnp.abs(out - ref)))
    # bf16 MXU operands (f32 accumulate) vs. the pure-f32 lax.conv reference.
    assert max_err < 3e-2 and mean_err < 3e-3, (max_err, mean_err)

    print("KERNEL_OK")
</pallas_src>

<mosaic_0001>
module attributes {stable_mosaic.version = 11 : i64} {
  func.func @_bottleneck_kernel(%arg0: i32, %arg1: i32, %arg2: memref<1x4x16x16xf32, #tpu.memory_space<vmem>>, %arg3: memref<1x1x16x16xf32, #tpu.memory_space<vmem>>, %arg4: memref<1x1x16x16xf32, #tpu.memory_space<vmem>>, %arg5: memref<16x4xbf16, #tpu.memory_space<vmem>>, %arg6: memref<1x4xf32, #tpu.memory_space<vmem>>, %arg7: memref<1x4xf32, #tpu.memory_space<vmem>>, %arg8: memref<9x4xf32, #tpu.memory_space<vmem>>, %arg9: memref<1x4xf32, #tpu.memory_space<vmem>>, %arg10: memref<1x4xf32, #tpu.memory_space<vmem>>, %arg11: memref<4x16xbf16, #tpu.memory_space<vmem>>, %arg12: memref<1x16xf32, #tpu.memory_space<vmem>>, %arg13: memref<1x16xf32, #tpu.memory_space<vmem>>, %arg14: memref<1x4x16x16xf32, #tpu.memory_space<vmem>>) attributes {dimension_semantics = [#tpu.dimension_semantics<parallel>, #tpu.dimension_semantics<parallel>], iteration_bounds = array<i64: 2, 4>, scalar_prefetch = 0 : i64, scratch_operands = 0 : i64, tpu.core_type = #tpu.core_type<tc>, window_params = [{transform_indices = @transform_0, window_bounds = array<i64: 1, 4, 16, 16>}, {transform_indices = @transform_1, window_bounds = array<i64: 1, 1, 16, 16>}, {transform_indices = @transform_2, window_bounds = array<i64: 1, 1, 16, 16>}, {pipeline_mode = #tpu.pipeline_mode<synchronous>, transform_indices = @transform_3, window_bounds = array<i64: 16, 4>}, {pipeline_mode = #tpu.pipeline_mode<synchronous>, transform_indices = @transform_4, window_bounds = array<i64: 1, 4>}, {pipeline_mode = #tpu.pipeline_mode<synchronous>, transform_indices = @transform_5, window_bounds = array<i64: 1, 4>}, {pipeline_mode = #tpu.pipeline_mode<synchronous>, transform_indices = @transform_6, window_bounds = array<i64: 9, 4>}, {pipeline_mode = #tpu.pipeline_mode<synchronous>, transform_indices = @transform_7, window_bounds = array<i64: 1, 4>}, {pipeline_mode = #tpu.pipeline_mode<synchronous>, transform_indices = @transform_8, window_bounds = array<i64: 1, 4>}, {pipeline_mode = #tpu.pipeline_mode<synchronous>, transform_indices = @transform_9, window_bounds = array<i64: 4, 16>}, {pipeline_mode = #tpu.pipeline_mode<synchronous>, transform_indices = @transform_10, window_bounds = array<i64: 1, 16>}, {pipeline_mode = #tpu.pipeline_mode<synchronous>, transform_indices = @transform_11, window_bounds = array<i64: 1, 16>}, {transform_indices = @transform_12, window_bounds = array<i64: 1, 4, 16, 16>}]} {
    %c0 = arith.constant 0 : index
    %c0_0 = arith.constant 0 : index
    %c0_1 = arith.constant 0 : index
    %c0_2 = arith.constant 0 : index
    %0 = vector.load %arg3[%c0, %c0_0, %c0_1, %c0_2] : memref<1x1x16x16xf32, #tpu.memory_space<vmem>>, vector<1x1x16x16xf32>
    %1 = vector.shape_cast %0 : vector<1x1x16x16xf32> to vector<1x16x16xf32>
    %2 = vector.shape_cast %1 : vector<1x16x16xf32> to vector<16x16xf32>
    %c0_3 = arith.constant 0 : index
    %c0_4 = arith.constant 0 : index
    %c0_5 = arith.constant 0 : index
    %c0_6 = arith.constant 0 : index
    %3 = vector.load %arg2[%c0_3, %c0_4, %c0_5, %c0_6] : memref<1x4x16x16xf32, #tpu.memory_space<vmem>>, vector<1x4x16x16xf32>
    %4 = vector.shape_cast %3 : vector<1x4x16x16xf32> to vector<4x16x16xf32>
    %5 = vector.shape_cast %4 : vector<4x16x16xf32> to vector<64x16xf32>
    %c0_7 = arith.constant 0 : index
    %c0_8 = arith.constant 0 : index
    %c0_9 = arith.constant 0 : index
    %c0_10 = arith.constant 0 : index
    %6 = vector.load %arg4[%c0_7, %c0_8, %c0_9, %c0_10] : memref<1x1x16x16xf32, #tpu.memory_space<vmem>>, vector<1x1x16x16xf32>
    %7 = vector.shape_cast %6 : vector<1x1x16x16xf32> to vector<1x16x16xf32>
    %8 = vector.shape_cast %7 : vector<1x16x16xf32> to vector<16x16xf32>
    %9 = tpu.concatenate %2, %5, %8 in 0 : vector<16x16xf32>, vector<64x16xf32>, vector<16x16xf32> -> vector<96x16xf32>
    %10 = arith.truncf %9 : vector<96x16xf32> to vector<96x16xbf16>
    %c0_11 = arith.constant 0 : index
    %c0_12 = arith.constant 0 : index
    %11 = vector.load %arg5[%c0_11, %c0_12] : memref<16x4xbf16, #tpu.memory_space<vmem>>, vector<16x4xbf16>
    %cst = arith.constant dense<0.000000e+00> : vector<96x4xf32>
    %12 = tpu.matmul %10, %11, %cst {dimension_numbers = #tpu.dot_dimension_numbers<[1], [0], [0], [1], [0, 0, 1, 1], [], []>} : vector<96x16xbf16>, vector<16x4xbf16>, vector<96x4xf32> -> vector<96x4xf32>
    %c0_13 = arith.constant 0 : index
    %c0_14 = arith.constant 0 : index
    %13 = vector.load %arg6[%c0_13, %c0_14] : memref<1x4xf32, #tpu.memory_space<vmem>>, vector<1x4xf32>
    %14 = vector.broadcast %13 : vector<1x4xf32> to vector<96x4xf32>
    %15 = arith.mulf %12, %14 : vector<96x4xf32>
    %c0_15 = arith.constant 0 : index
    %c0_16 = arith.constant 0 : index
    %16 = vector.load %arg7[%c0_15, %c0_16] : memref<1x4xf32, #tpu.memory_space<vmem>>, vector<1x4xf32>
    %17 = vector.broadcast %16 : vector<1x4xf32> to vector<96x4xf32>
    %18 = arith.addf %15, %17 : vector<96x4xf32>
    %cst_17 = arith.constant 0.000000e+00 : f32
    %19 = vector.broadcast %cst_17 : f32 to vector<96x4xf32>
    %20 = arith.maximumf %18, %19 : vector<96x4xf32>
    %21 = tpu.iota {dimensions = array<i32: 0>} : vector<96x1xi32>
    %c16_i32 = arith.constant 16 : i32
    %c0_i32 = arith.constant 0 : i32
    %22 = arith.cmpi eq, %c16_i32, %c0_i32 : i32
    %c1_i32 = arith.constant 1 : i32
    %23 = arith.select %22, %c1_i32, %c16_i32 : i32
    %24 = vector.broadcast %23 : i32 to vector<96x1xi32>
    %25 = arith.remsi %21, %24 : vector<96x1xi32>
    %c0_i32_18 = arith.constant 0 : i32
    %26 = vector.broadcast %c0_i32_18 : i32 to vector<96x1xi32>
    %27 = arith.cmpi ne, %25, %26 : vector<96x1xi32>
    %c0_i32_19 = arith.constant 0 : i32
    %28 = vector.broadcast %c0_i32_19 : i32 to vector<96x1xi32>
    %29 = arith.cmpi slt, %25, %28 : vector<96x1xi32>
    %c0_i32_20 = arith.constant 0 : i32
    %30 = arith.cmpi slt, %23, %c0_i32_20 : i32
    %31 = vector.broadcast %30 : i1 to vector<96x1xi1>
    %32 = vector.broadcast %31 : vector<96x1xi1> to vector<96x1xi1>
    %33 = arith.xori %29, %32 : vector<96x1xi1>
    %34 = arith.andi %33, %27 : vector<96x1xi1>
    %35 = vector.broadcast %23 : i32 to vector<96x1xi32>
    %36 = arith.addi %25, %35 : vector<96x1xi32>
    %37 = arith.select %34, %36, %25 : vector<96x1xi1>, vector<96x1xi32>
    %c0_i32_21 = arith.constant 0 : i32
    %38 = arith.cmpi eq, %arg1, %c0_i32_21 : i32
    %c16_i32_22 = arith.constant 16 : i32
    %39 = vector.broadcast %c16_i32_22 : i32 to vector<96x1xi32>
    %40 = arith.cmpi slt, %21, %39 : vector<96x1xi32>
    %41 = vector.broadcast %38 : i1 to vector<96x1xi1>
    %42 = arith.andi %41, %40 : vector<96x1xi1>
    %c3_i32 = arith.constant 3 : i32
    %43 = arith.cmpi eq, %arg1, %c3_i32 : i32
    %c80_i32 = arith.constant 80 : i32
    %44 = vector.broadcast %c80_i32 : i32 to vector<96x1xi32>
    %45 = arith.cmpi sge, %21, %44 : vector<96x1xi32>
    %46 = vector.broadcast %43 : i1 to vector<96x1xi1>
    %47 = arith.andi %46, %45 : vector<96x1xi1>
    %48 = arith.ori %42, %47 : vector<96x1xi1>
    %cst_23 = arith.constant 0.000000e+00 : f32
    %49 = vector.shape_cast %48 : vector<96x1xi1> to vector<96x1xi1>
    %50 = vector.broadcast %49 : vector<96x1xi1> to vector<96x4xi1>
    %51 = vector.broadcast %cst_23 : f32 to vector<96x4xf32>
    %52 = arith.select %50, %51, %20 : vector<96x4xi1>, vector<96x4xf32>
    %c0_i32_24 = arith.constant 0 : i32
    %53 = vector.broadcast %c0_i32_24 : i32 to vector<96x1xi32>
    %54 = arith.cmpi eq, %37, %53 : vector<96x1xi32>
    %c1_i32_25 = arith.constant 1 : i32
    %55 = tpu.dynamic_rotate %52 by %c1_i32_25 dim 0 : vector<96x4xf32>, i32 -> vector<96x4xf32>
    %cst_26 = arith.constant 0.000000e+00 : f32
    %56 = vector.shape_cast %54 : vector<96x1xi1> to vector<96x1xi1>
    %57 = vector.broadcast %56 : vector<96x1xi1> to vector<96x4xi1>
    %58 = vector.broadcast %cst_26 : f32 to vector<96x4xf32>
    %59 = arith.select %57, %58, %55 : vector<96x4xi1>, vector<96x4xf32>
    %c15_i32 = arith.constant 15 : i32
    %60 = vector.broadcast %c15_i32 : i32 to vector<96x1xi32>
    %61 = arith.cmpi eq, %37, %60 : vector<96x1xi32>
    %c95_i32 = arith.constant 95 : i32
    %62 = tpu.dynamic_rotate %52 by %c95_i32 dim 0 : vector<96x4xf32>, i32 -> vector<96x4xf32>
    %cst_27 = arith.constant 0.000000e+00 : f32
    %63 = vector.shape_cast %61 : vector<96x1xi1> to vector<96x1xi1>
    %64 = vector.broadcast %63 : vector<96x1xi1> to vector<96x4xi1>
    %65 = vector.broadcast %cst_27 : f32 to vector<96x4xf32>
    %66 = arith.select %64, %65, %62 : vector<96x4xi1>, vector<96x4xf32>
    %c0_28 = arith.constant 0 : index
    %c0_29 = arith.constant 0 : index
    %67 = vector.load %arg8[%c0_28, %c0_29] : memref<9x4xf32, #tpu.memory_space<vmem>>, vector<9x4xf32>
    %cst_30 = arith.constant 0.000000e+00 : f32
    %68 = vector.broadcast %cst_30 : f32 to vector<64x4xf32>
    %69 = vector.extract_strided_slice %59 {offsets = [0, 0], sizes = [64, 4], strides = [1, 1]} : vector<96x4xf32> to vector<64x4xf32>
    %70 = vector.extract_strided_slice %67 {offsets = [0, 0], sizes = [1, 4], strides = [1, 1]} : vector<9x4xf32> to vector<1x4xf32>
    %71 = vector.shape_cast %70 : vector<1x4xf32> to vector<4xf32>
    %72 = vector.shape_cast %71 : vector<4xf32> to vector<1x4xf32>
    %73 = vector.broadcast %72 : vector<1x4xf32> to vector<64x4xf32>
    %74 = arith.mulf %69, %73 : vector<64x4xf32>
    %75 = arith.addf %68, %74 : vector<64x4xf32>
    %76 = vector.extract_strided_slice %52 {offsets = [0, 0], sizes = [64, 4], strides = [1, 1]} : vector<96x4xf32> to vector<64x4xf32>
    %77 = vector.extract_strided_slice %67 {offsets = [1, 0], sizes = [1, 4], strides = [1, 1]} : vector<9x4xf32> to vector<1x4xf32>
    %78 = vector.shape_cast %77 : vector<1x4xf32> to vector<4xf32>
    %79 = vector.shape_cast %78 : vector<4xf32> to vector<1x4xf32>
    %80 = vector.broadcast %79 : vector<1x4xf32> to vector<64x4xf32>
    %81 = arith.mulf %76, %80 : vector<64x4xf32>
    %82 = arith.addf %75, %81 : vector<64x4xf32>
    %83 = vector.extract_strided_slice %66 {offsets = [0, 0], sizes = [64, 4], strides = [1, 1]} : vector<96x4xf32> to vector<64x4xf32>
    %84 = vector.extract_strided_slice %67 {offsets = [2, 0], sizes = [1, 4], strides = [1, 1]} : vector<9x4xf32> to vector<1x4xf32>
    %85 = vector.shape_cast %84 : vector<1x4xf32> to vector<4xf32>
    %86 = vector.shape_cast %85 : vector<4xf32> to vector<1x4xf32>
    %87 = vector.broadcast %86 : vector<1x4xf32> to vector<64x4xf32>
    %88 = arith.mulf %83, %87 : vector<64x4xf32>
    %89 = arith.addf %82, %88 : vector<64x4xf32>
    %90 = vector.extract_strided_slice %59 {offsets = [16, 0], sizes = [64, 4], strides = [1, 1]} : vector<96x4xf32> to vector<64x4xf32>
    %91 = vector.extract_strided_slice %67 {offsets = [3, 0], sizes = [1, 4], strides = [1, 1]} : vector<9x4xf32> to vector<1x4xf32>
    %92 = vector.shape_cast %91 : vector<1x4xf32> to vector<4xf32>
    %93 = vector.shape_cast %92 : vector<4xf32> to vector<1x4xf32>
    %94 = vector.broadcast %93 : vector<1x4xf32> to vector<64x4xf32>
    %95 = arith.mulf %90, %94 : vector<64x4xf32>
    %96 = arith.addf %89, %95 : vector<64x4xf32>
    %97 = vector.extract_strided_slice %52 {offsets = [16, 0], sizes = [64, 4], strides = [1, 1]} : vector<96x4xf32> to vector<64x4xf32>
    %98 = vector.extract_strided_slice %67 {offsets = [4, 0], sizes = [1, 4], strides = [1, 1]} : vector<9x4xf32> to vector<1x4xf32>
    %99 = vector.shape_cast %98 : vector<1x4xf32> to vector<4xf32>
    %100 = vector.shape_cast %99 : vector<4xf32> to vector<1x4xf32>
    %101 = vector.broadcast %100 : vector<1x4xf32> to vector<64x4xf32>
    %102 = arith.mulf %97, %101 : vector<64x4xf32>
    %103 = arith.addf %96, %102 : vector<64x4xf32>
    %104 = vector.extract_strided_slice %66 {offsets = [16, 0], sizes = [64, 4], strides = [1, 1]} : vector<96x4xf32> to vector<64x4xf32>
    %105 = vector.extract_strided_slice %67 {offsets = [5, 0], sizes = [1, 4], strides = [1, 1]} : vector<9x4xf32> to vector<1x4xf32>
    %106 = vector.shape_cast %105 : vector<1x4xf32> to vector<4xf32>
    %107 = vector.shape_cast %106 : vector<4xf32> to vector<1x4xf32>
    %108 = vector.broadcast %107 : vector<1x4xf32> to vector<64x4xf32>
    %109 = arith.mulf %104, %108 : vector<64x4xf32>
    %110 = arith.addf %103, %109 : vector<64x4xf32>
    %111 = vector.extract_strided_slice %59 {offsets = [32, 0], sizes = [64, 4], strides = [1, 1]} : vector<96x4xf32> to vector<64x4xf32>
    %112 = vector.extract_strided_slice %67 {offsets = [6, 0], sizes = [1, 4], strides = [1, 1]} : vector<9x4xf32> to vector<1x4xf32>
    %113 = vector.shape_cast %112 : vector<1x4xf32> to vector<4xf32>
    %114 = vector.shape_cast %113 : vector<4xf32> to vector<1x4xf32>
    %115 = vector.broadcast %114 : vector<1x4xf32> to vector<64x4xf32>
    %116 = arith.mulf %111, %115 : vector<64x4xf32>
    %117 = arith.addf %110, %116 : vector<64x4xf32>
    %118 = vector.extract_strided_slice %52 {offsets = [32, 0], sizes = [64, 4], strides = [1, 1]} : vector<96x4xf32> to vector<64x4xf32>
    %119 = vector.extract_strided_slice %67 {offsets = [7, 0], sizes = [1, 4], strides = [1, 1]} : vector<9x4xf32> to vector<1x4xf32>
    %120 = vector.shape_cast %119 : vector<1x4xf32> to vector<4xf32>
    %121 = vector.shape_cast %120 : vector<4xf32> to vector<1x4xf32>
    %122 = vector.broadcast %121 : vector<1x4xf32> to vector<64x4xf32>
    %123 = arith.mulf %118, %122 : vector<64x4xf32>
    %124 = arith.addf %117, %123 : vector<64x4xf32>
    %125 = vector.extract_strided_slice %66 {offsets = [32, 0], sizes = [64, 4], strides = [1, 1]} : vector<96x4xf32> to vector<64x4xf32>
    %126 = vector.extract_strided_slice %67 {offsets = [8, 0], sizes = [1, 4], strides = [1, 1]} : vector<9x4xf32> to vector<1x4xf32>
    %127 = vector.shape_cast %126 : vector<1x4xf32> to vector<4xf32>
    %128 = vector.shape_cast %127 : vector<4xf32> to vector<1x4xf32>
    %129 = vector.broadcast %128 : vector<1x4xf32> to vector<64x4xf32>
    %130 = arith.mulf %125, %129 : vector<64x4xf32>
    %131 = arith.addf %124, %130 : vector<64x4xf32>
    %c0_31 = arith.constant 0 : index
    %c0_32 = arith.constant 0 : index
    %132 = vector.load %arg9[%c0_31, %c0_32] : memref<1x4xf32, #tpu.memory_space<vmem>>, vector<1x4xf32>
    %133 = vector.broadcast %132 : vector<1x4xf32> to vector<64x4xf32>
    %134 = arith.mulf %131, %133 : vector<64x4xf32>
    %c0_33 = arith.constant 0 : index
    %c0_34 = arith.constant 0 : index
    %135 = vector.load %arg10[%c0_33, %c0_34] : memref<1x4xf32, #tpu.memory_space<vmem>>, vector<1x4xf32>
    %136 = vector.broadcast %135 : vector<1x4xf32> to vector<64x4xf32>
    %137 = arith.addf %134, %136 : vector<64x4xf32>
    %cst_35 = arith.constant 0.000000e+00 : f32
    %138 = vector.broadcast %cst_35 : f32 to vector<64x4xf32>
    %139 = arith.maximumf %137, %138 : vector<64x4xf32>
    %140 = arith.truncf %139 : vector<64x4xf32> to vector<64x4xbf16>
    %c0_36 = arith.constant 0 : index
    %c0_37 = arith.constant 0 : index
    %141 = vector.load %arg11[%c0_36, %c0_37] : memref<4x16xbf16, #tpu.memory_space<vmem>>, vector<4x16xbf16>
    %cst_38 = arith.constant dense<0.000000e+00> : vector<64x16xf32>
    %142 = tpu.matmul %140, %141, %cst_38 {dimension_numbers = #tpu.dot_dimension_numbers<[1], [0], [0], [1], [0, 0, 1, 1], [], []>} : vector<64x4xbf16>, vector<4x16xbf16>, vector<64x16xf32> -> vector<64x16xf32>
    %c0_39 = arith.constant 0 : index
    %c0_40 = arith.constant 0 : index
    %143 = vector.load %arg12[%c0_39, %c0_40] : memref<1x16xf32, #tpu.memory_space<vmem>>, vector<1x16xf32>
    %144 = vector.broadcast %143 : vector<1x16xf32> to vector<64x16xf32>
    %145 = arith.mulf %142, %144 : vector<64x16xf32>
    %c0_41 = arith.constant 0 : index
    %c0_42 = arith.constant 0 : index
    %146 = vector.load %arg13[%c0_41, %c0_42] : memref<1x16xf32, #tpu.memory_space<vmem>>, vector<1x16xf32>
    %147 = vector.broadcast %146 : vector<1x16xf32> to vector<64x16xf32>
    %148 = arith.addf %145, %147 : vector<64x16xf32>
    %c0_43 = arith.constant 0 : index
    %c0_44 = arith.constant 0 : index
    %c0_45 = arith.constant 0 : index
    %c0_46 = arith.constant 0 : index
    %149 = vector.load %arg2[%c0_43, %c0_44, %c0_45, %c0_46] : memref<1x4x16x16xf32, #tpu.memory_space<vmem>>, vector<1x4x16x16xf32>
    %150 = vector.shape_cast %149 : vector<1x4x16x16xf32> to vector<4x16x16xf32>
    %151 = vector.shape_cast %150 : vector<4x16x16xf32> to vector<64x16xf32>
    %152 = arith.addf %148, %151 : vector<64x16xf32>
    %cst_47 = arith.constant 0.000000e+00 : f32
    %153 = vector.broadcast %cst_47 : f32 to vector<64x16xf32>
    %154 = arith.maximumf %152, %153 : vector<64x16xf32>
    %155 = vector.shape_cast %154 : vector<64x16xf32> to vector<4x16x16xf32>
    %c0_48 = arith.constant 0 : index
    %c0_49 = arith.constant 0 : index
    %c0_50 = arith.constant 0 : index
    %c0_51 = arith.constant 0 : index
    %156 = vector.load %arg14[%c0_48, %c0_49, %c0_50, %c0_51] : memref<1x4x16x16xf32, #tpu.memory_space<vmem>>, vector<1x4x16x16xf32>
    %157 = vector.shape_cast %156 : vector<1x4x16x16xf32> to vector<4x16x16xf32>
    %158 = vector.shape_cast %155 : vector<4x16x16xf32> to vector<1x4x16x16xf32>
    tpu.vector_store %arg14[%c0_48, %c0_49, %c0_50, %c0_51], %158 {strides = array<i32>} : memref<1x4x16x16xf32, #tpu.memory_space<vmem>>, vector<1x4x16x16xf32>,
    return
  }
  func.func @transform_0(%arg0: i32, %arg1: i32) -> (i32, i32, i32, i32) {
    %c0_i32 = arith.constant 0 : i32
    %c0_i32_0 = arith.constant 0 : i32
    %c0_i32_1 = arith.constant 0 : i32
    return %arg0, %arg1, %c0_i32, %c0_i32_0 : i32, i32, i32, i32
  }
  func.func @transform_1(%arg0: i32, %arg1: i32) -> (i32, i32, i32, i32) {
    %c4_i32 = arith.constant 4 : i32
    %0 = arith.muli %arg1, %c4_i32 : i32
    %c1_i32 = arith.constant 1 : i32
    %1 = arith.subi %0, %c1_i32 : i32
    %c0_i32 = arith.constant 0 : i32
    %2 = arith.maxsi %1, %c0_i32 : i32
    %c0_i32_0 = arith.constant 0 : i32
    %c0_i32_1 = arith.constant 0 : i32
    %c0_i32_2 = arith.constant 0 : i32
    return %arg0, %2, %c0_i32_0, %c0_i32_1 : i32, i32, i32, i32
  }
  func.func @transform_2(%arg0: i32, %arg1: i32) -> (i32, i32, i32, i32) {
    %c4_i32 = arith.constant 4 : i32
    %0 = arith.muli %arg1, %c4_i32 : i32
    %c4_i32_0 = arith.constant 4 : i32
    %1 = arith.addi %0, %c4_i32_0 : i32
    %c15_i32 = arith.constant 15 : i32
    %2 = arith.minsi %1, %c15_i32 : i32
    %c0_i32 = arith.constant 0 : i32
    %c0_i32_1 = arith.constant 0 : i32
    %c0_i32_2 = arith.constant 0 : i32
    return %arg0, %2, %c0_i32, %c0_i32_1 : i32, i32, i32, i32
  }
  func.func @transform_3(%arg0: i32, %arg1: i32) -> (i32, i32) {
    %c0_i32 = arith.constant 0 : i32
    %c0_i32_0 = arith.constant 0 : i32
    %c0_i32_1 = arith.constant 0 : i32
    return %c0_i32, %c0_i32_0 : i32, i32
  }
  func.func @transform_4(%arg0: i32, %arg1: i32) -> (i32, i32) {
    %c0_i32 = arith.constant 0 : i32
    %c0_i32_0 = arith.constant 0 : i32
    %c0_i32_1 = arith.constant 0 : i32
    return %c0_i32, %c0_i32_0 : i32, i32
  }
  func.func @transform_5(%arg0: i32, %arg1: i32) -> (i32, i32) {
    %c0_i32 = arith.constant 0 : i32
    %c0_i32_0 = arith.constant 0 : i32
    %c0_i32_1 = arith.constant 0 : i32
    return %c0_i32, %c0_i32_0 : i32, i32
  }
  func.func @transform_6(%arg0: i32, %arg1: i32) -> (i32, i32) {
    %c0_i32 = arith.constant 0 : i32
    %c0_i32_0 = arith.constant 0 : i32
    %c0_i32_1 = arith.constant 0 : i32
    return %c0_i32, %c0_i32_0 : i32, i32
  }
  func.func @transform_7(%arg0: i32, %arg1: i32) -> (i32, i32) {
    %c0_i32 = arith.constant 0 : i32
    %c0_i32_0 = arith.constant 0 : i32
    %c0_i32_1 = arith.constant 0 : i32
    return %c0_i32, %c0_i32_0 : i32, i32
  }
  func.func @transform_8(%arg0: i32, %arg1: i32) -> (i32, i32) {
    %c0_i32 = arith.constant 0 : i32
    %c0_i32_0 = arith.constant 0 : i32
    %c0_i32_1 = arith.constant 0 : i32
    return %c0_i32, %c0_i32_0 : i32, i32
  }
  func.func @transform_9(%arg0: i32, %arg1: i32) -> (i32, i32) {
    %c0_i32 = arith.constant 0 : i32
    %c0_i32_0 = arith.constant 0 : i32
    %c0_i32_1 = arith.constant 0 : i32
    return %c0_i32, %c0_i32_0 : i32, i32
  }
  func.func @transform_10(%arg0: i32, %arg1: i32) -> (i32, i32) {
    %c0_i32 = arith.constant 0 : i32
    %c0_i32_0 = arith.constant 0 : i32
    %c0_i32_1 = arith.constant 0 : i32
    return %c0_i32, %c0_i32_0 : i32, i32
  }
  func.func @transform_11(%arg0: i32, %arg1: i32) -> (i32, i32) {
    %c0_i32 = arith.constant 0 : i32
    %c0_i32_0 = arith.constant 0 : i32
    %c0_i32_1 = arith.constant 0 : i32
    return %c0_i32, %c0_i32_0 : i32, i32
  }
  func.func @transform_12(%arg0: i32, %arg1: i32) -> (i32, i32, i32, i32) {
    %c0_i32 = arith.constant 0 : i32
    %c0_i32_0 = arith.constant 0 : i32
    %c0_i32_1 = arith.constant 0 : i32
    return %arg0, %arg1, %c0_i32, %c0_i32_0 : i32, i32, i32, i32
  }
}

</mosaic_0001>

<llo_original>
// kernel: tpu_custom_call.1
$region0: #{tpu_custom_call.1}
  #allocation0 [shape = 'u32[]', space=smem, size = 0x4, offset = 0x4, fixed_abs, tag = 'smem constant byte address 0x4 - core index']
  #allocation1 [shape = 'u32[144,128]{1,0:T(1,128)}', space=vmem, size = 0x12000, scoped, tag = 'internal scratch']
  %s0 = inlined_call_operand.hbm [shape: f32[2,16,16,16], index: 0, kind: input, shape index: {}]
  %s1 = inlined_call_operand.hbm [shape: f32[2,16,16,16], index: 1, kind: input, shape index: {}]
  %s2 = inlined_call_operand.hbm [shape: f32[2,16,16,16], index: 2, kind: input, shape index: {}]
  %s3 = inlined_call_operand.vmem [shape: bf16[16,4], index: 3, kind: input, shape index: {}]
  %s4 = inlined_call_operand.vmem [shape: f32[1,4], index: 4, kind: input, shape index: {}]
  %s5 = inlined_call_operand.vmem [shape: f32[1,4], index: 5, kind: input, shape index: {}]
  %s6 = inlined_call_operand.vmem [shape: f32[9,4], index: 6, kind: input, shape index: {}]
  %s7 = inlined_call_operand.vmem [shape: f32[1,4], index: 7, kind: input, shape index: {}]
  %s8 = inlined_call_operand.vmem [shape: f32[1,4], index: 8, kind: input, shape index: {}]
  %s9 = inlined_call_operand.vmem [shape: bf16[4,16], index: 9, kind: input, shape index: {}]
  %s10 = inlined_call_operand.vmem [shape: f32[1,16], index: 10, kind: input, shape index: {}]
  %s11 = inlined_call_operand.vmem [shape: f32[1,16], index: 11, kind: input, shape index: {}]
  %s12 = inlined_call_operand.hbm [shape: f32[2,16,16,16], index: 12, kind: output, shape index: {}]
  %s13 = sld [smem:[#allocation0]]
  $region93: #{tpu_custom_call.1} parent=0
    _
  %s15 = ssub.s32 1, %s13
  %s16 = scalar_select 0, %s15, %s13
  $region1: #{tpu_custom_call.1} parent=0
    #allocation2 [shape = 'u8[65536]{0}', space=vmem, size = 0x10000, scoped, tag = 'input window, operand 0']
    #allocation3 [shape = 's32[2]{0}', space=sflag, size = 0x8, scoped, tag = 'scoped memory for tpu_custom_call.1']
    #allocation4 [shape = 's32[2]{0}', space=sflag, size = 0x8, scoped, tag = 'scoped memory for tpu_custom_call.1']
    #allocation5 [shape = 'u8[16384]{0}', space=vmem, size = 0x4000, scoped, tag = 'input window, operand 1']
    #allocation6 [shape = 's32[2]{0}', space=sflag, size = 0x8, scoped, tag = 'scoped memory for tpu_custom_call.1']
    #allocation7 [shape = 'u8[16384]{0}', space=vmem, size = 0x4000, scoped, tag = 'input window, operand 2']
    #allocation8 [shape = 'u8[65536]{0}', space=vmem, size = 0x10000, scoped, tag = 'output window, operand 0']
    %17 = vsyncpa [#allocation3], 0
    %s18 = scalar_lea.sflag [#allocation3], 1
    %19 = vsyncpa %s18, 0
    %20 = vsyncpa [#allocation6], 0
    %s21 = scalar_lea.sflag [#allocation6], 1
    %22 = vsyncpa %s21, 0
    %23 = vsyncpa [#allocation4], 0
    %s24 = scalar_lea.sflag [#allocation4], 1
    %25 = vsyncpa %s24, 0
    loop: start=0, step=1, limit=10
    $region2: #{tpu_custom_call.1} parent=1 // loop_pre_header
      _
    $region3: #{tpu_custom_call.1} parent=1 // loop_header
      %s27 = sphi 0, %s31
      %p28 = scmp.ge.s32.totalorder %s27, 10
      %s34 = sphi 0, %s46
      %s35 = sphi 0, %s42
      %s36 = sphi 0, %s34
      %s37 = sphi 0, %s35
      %s38 = sphi 0, %s36
      %s39 = sphi 0, %s37
      %s51 = sphi 0, %s53
      %s54 = sphi 0, %s51
      %s55 = sphi 0, %s54
      %s71 = sphi 0, %s55
      %s87 = sphi 0, %s89
      %s90 = sphi 0, %s87
      %s91 = sphi 0, %s90
      %s107 = sphi 0, %s91
      %s123 = sphi 0, %s125
      %s126 = sphi 0, %s123
      %s127 = sphi 0, %s126
      %s143 = sphi 0, %s127
      %s147 = sphi 0, %s147
      %s149 = sphi 0, %s147
      %s150 = sphi 0, %s149
      %s164 = sphi 0, %s150
      %s168 = sphi 0, %s168
      %s170 = sphi 0, %s168
      %s171 = sphi 0, %s170
      %s185 = sphi 0, %s171
      %s189 = sphi 0, %s189
      %s191 = sphi 0, %s189
      %s192 = sphi 0, %s191
      %s206 = sphi 0, %s192
      %s210 = sphi 0, %s210
      %s212 = sphi 0, %s210
      %s213 = sphi 0, %s212
      %s227 = sphi 0, %s213
      %s231 = sphi 0, %s231
      %s233 = sphi 0, %s231
      %s234 = sphi 0, %s233
      %s248 = sphi 0, %s234
      %s252 = sphi 0, %s252
      %s254 = sphi 0, %s252
      %s255 = sphi 0, %s254
      %s269 = sphi 0, %s255
      %s273 = sphi 0, %s273
      %s275 = sphi 0, %s273
      %s276 = sphi 0, %s275
      %s290 = sphi 0, %s276
      %s294 = sphi 0, %s294
      %s296 = sphi 0, %s294
      %s297 = sphi 0, %s296
      %s311 = sphi 0, %s297
      %s315 = sphi 0, %s315
      %s317 = sphi 0, %s315
      %s318 = sphi 0, %s317
      %s332 = sphi 0, %s318
      %s340 = sphi 0, %s342
      %s343 = sphi 0, %s340
      %s344 = sphi 0, %s343
      %s360 = sphi 0, %s344
    $region4: #{tpu_custom_call.1} parent=1 // loop_header_branch
      %30 = sbr.rel (%p28) target = $region8
    $region5: #{tpu_custom_call.1} parent=1 // loop_body
      %s32 = ssub.s32 %s27, 1
      %s33 = ssub.s32 %s27, 2
      %s40 = sadd.s32 1, %s35
      %p41 = scmp.ge.s32.totalorder %s40, 4
      %s42 = scalar_select %p41, 0, %s40
      %s43 = sadd.s32 1, %s34
      %s44 = scalar_select %p41, %s43, %s34
      %p45 = scmp.ge.s32.totalorder %s44, 2
      %s46 = scalar_select %p45, 0, %s44
      %s47 = ssub.s32 %s34, %s46
      %s48 = ssub.s32 %s35, %s42
      %s49 = sor.u32 %s47, %s48
      %p50 = scmp.eq.s32.totalorder %s49, 0
      %s52 = sadd.s32 %s51, 1
      %s53 = scalar_select %p50, %s51, %s52
      %p56 = pneg %p50
      %p57 = scmp.eq.s32.totalorder %s27, 7
      %p58 = por %p56, %p57
      %p59 = scmp.ne.s32.totalorder %s51, %s54
      %p60 = scmp.eq.s32.totalorder %s27, 0
      %p61 = por %p59, %p60
      %p62 = scmp.ne.s32.totalorder %s51, %s54
      %p63 = scmp.eq.s32.totalorder %s32, 7
      %p64 = por %p62, %p63
      %p65 = scmp.ne.s32.totalorder %s54, %s55
      %p66 = scmp.eq.s32.totalorder %s32, 0
      %p67 = por %p65, %p66
      %p68 = scmp.ne.s32.totalorder %s54, %s55
      %p69 = scmp.eq.s32.totalorder %s33, 7
      %p70 = por %p68, %p69
      %p72 = scmp.ne.s32.totalorder %s55, %s71
      %p73 = scmp.eq.s32.totalorder %s33, 0
      %p74 = por %p72, %p73
      %s75 = smul.u32 %s35, 4
      %s76 = ssub.s32 %s75, 1
      %p77 = scmp.gt.s32.totalorder %s76, 0
      %s78 = scalar_select %p77, %s76, 0
      %s79 = smul.u32 %s42, 4
      %s80 = ssub.s32 %s79, 1
      %p81 = scmp.gt.s32.totalorder %s80, 0
      %s82 = scalar_select %p81, %s80, 0
      %s83 = ssub.s32 %s34, %s46
      %s84 = ssub.s32 %s78, %s82
      %s85 = sor.u32 %s83, %s84
      %p86 = scmp.eq.s32.totalorder %s85, 0
      %s88 = sadd.s32 %s87, 1
      %s89 = scalar_select %p86, %s87, %s88
      %p92 = pneg %p86
      %p93 = scmp.eq.s32.totalorder %s27, 7
      %p94 = por %p92, %p93
      %p95 = scmp.ne.s32.totalorder %s87, %s90
      %p96 = scmp.eq.s32.totalorder %s27, 0
      %p97 = por %p95, %p96
      %p98 = scmp.ne.s32.totalorder %s87, %s90
      %p99 = scmp.eq.s32.totalorder %s32, 7
      %p100 = por %p98, %p99
      %p101 = scmp.ne.s32.totalorder %s90, %s91
      %p102 = scmp.eq.s32.totalorder %s32, 0
      %p103 = por %p101, %p102
      %p104 = scmp.ne.s32.totalorder %s90, %s91
      %p105 = scmp.eq.s32.totalorder %s33, 7
      %p106 = por %p104, %p105
      %p108 = scmp.ne.s32.totalorder %s91, %s107
      %p109 = scmp.eq.s32.totalorder %s33, 0
      %p110 = por %p108, %p109
      %s111 = smul.u32 %s35, 4
      %s112 = sadd.s32 %s111, 4
      %p113 = scmp.lt.s32.totalorder %s112, 15
      %s114 = scalar_select %p113, %s112, 15
      %s115 = smul.u32 %s42, 4
      %s116 = sadd.s32 %s115, 4
      %p117 = scmp.lt.s32.totalorder %s116, 15
      %s118 = scalar_select %p117, %s116, 15
      %s119 = ssub.s32 %s34, %s46
      %s120 = ssub.s32 %s114, %s118
      %s121 = sor.u32 %s119, %s120
      %p122 = scmp.eq.s32.totalorder %s121, 0
      %s124 = sadd.s32 %s123, 1
      %s125 = scalar_select %p122, %s123, %s124
      %p128 = pneg %p122
      %p129 = scmp.eq.s32.totalorder %s27, 7
      %p130 = por %p128, %p129
      %p131 = scmp.ne.s32.totalorder %s123, %s126
      %p132 = scmp.eq.s32.totalorder %s27, 0
      %p133 = por %p131, %p132
      %p134 = scmp.ne.s32.totalorder %s123, %s126
      %p135 = scmp.eq.s32.totalorder %s32, 7
      %p136 = por %p134, %p135
      %p137 = scmp.ne.s32.totalorder %s126, %s127
      %p138 = scmp.eq.s32.totalorder %s32, 0
      %p139 = por %p137, %p138
      %p140 = scmp.ne.s32.totalorder %s126, %s127
      %p141 = scmp.eq.s32.totalorder %s33, 7
      %p142 = por %p140, %p141
      %p144 = scmp.ne.s32.totalorder %s127, %s143
      %p145 = scmp.eq.s32.totalorder %s33, 0
      %p146 = por %p144, %p145
      %s148 = sadd.s32 %s147, 1
      %p151 = scmp.eq.s32.totalorder %s27, 7
      %p152 = scmp.ne.s32.totalorder %s147, %s149
      %p153 = scmp.eq.s32.totalorder %s27, 0
      %p154 = por %p152, %p153
      %p155 = scmp.ne.s32.totalorder %s147, %s149
      %p156 = scmp.eq.s32.totalorder %s32, 7
      %p157 = por %p155, %p156
      %p158 = scmp.ne.s32.totalorder %s149, %s150
      %p159 = scmp.eq.s32.totalorder %s32, 0
      %p160 = por %p158, %p159
      %p161 = scmp.ne.s32.totalorder %s149, %s150
      %p162 = scmp.eq.s32.totalorder %s33, 7
      %p163 = por %p161, %p162
      %p165 = scmp.ne.s32.totalorder %s150, %s164
      %p166 = scmp.eq.s32.totalorder %s33, 0
      %p167 = por %p165, %p166
      %s169 = sadd.s32 %s168, 1
      %p172 = scmp.eq.s32.totalorder %s27, 7
      %p173 = scmp.ne.s32.totalorder %s168, %s170
      %p174 = scmp.eq.s32.totalorder %s27, 0
      %p175 = por %p173, %p174
      %p176 = scmp.ne.s32.totalorder %s168, %s170
      %p177 = scmp.eq.s32.totalorder %s32, 7
      %p178 = por %p176, %p177
      %p179 = scmp.ne.s32.totalorder %s170, %s171
      %p180 = scmp.eq.s32.totalorder %s32, 0
      %p181 = por %p179, %p180
      %p182 = scmp.ne.s32.totalorder %s170, %s171
      %p183 = scmp.eq.s32.totalorder %s33, 7
      %p184 = por %p182, %p183
      %p186 = scmp.ne.s32.totalorder %s171, %s185
      %p187 = scmp.eq.s32.totalorder %s33, 0
      %p188 = por %p186, %p187
      %s190 = sadd.s32 %s189, 1
      %p193 = scmp.eq.s32.totalorder %s27, 7
      %p194 = scmp.ne.s32.totalorder %s189, %s191
      %p195 = scmp.eq.s32.totalorder %s27, 0
      %p196 = por %p194, %p195
      %p197 = scmp.ne.s32.totalorder %s189, %s191
      %p198 = scmp.eq.s32.totalorder %s32, 7
      %p199 = por %p197, %p198
      %p200 = scmp.ne.s32.totalorder %s191, %s192
      %p201 = scmp.eq.s32.totalorder %s32, 0
      %p202 = por %p200, %p201
      %p203 = scmp.ne.s32.totalorder %s191, %s192
      %p204 = scmp.eq.s32.totalorder %s33, 7
      %p205 = por %p203, %p204
      %p207 = scmp.ne.s32.totalorder %s192, %s206
      %p208 = scmp.eq.s32.totalorder %s33, 0
      %p209 = por %p207, %p208
      %s211 = sadd.s32 %s210, 1
      %p214 = scmp.eq.s32.totalorder %s27, 7
      %p215 = scmp.ne.s32.totalorder %s210, %s212
      %p216 = scmp.eq.s32.totalorder %s27, 0
      %p217 = por %p215, %p216
      %p218 = scmp.ne.s32.totalorder %s210, %s212
      %p219 = scmp.eq.s32.totalorder %s32, 7
      %p220 = por %p218, %p219
      %p221 = scmp.ne.s32.totalorder %s212, %s213
      %p222 = scmp.eq.s32.totalorder %s32, 0
      %p223 = por %p221, %p222
      %p224 = scmp.ne.s32.totalorder %s212, %s213
      %p225 = scmp.eq.s32.totalorder %s33, 7
      %p226 = por %p224, %p225
      %p228 = scmp.ne.s32.totalorder %s213, %s227
      %p229 = scmp.eq.s32.totalorder %s33, 0
      %p230 = por %p228, %p229
      %s232 = sadd.s32 %s231, 1
      %p235 = scmp.eq.s32.totalorder %s27, 7
      %p236 = scmp.ne.s32.totalorder %s231, %s233
      %p237 = scmp.eq.s32.totalorder %s27, 0
      %p238 = por %p236, %p237
      %p239 = scmp.ne.s32.totalorder %s231, %s233
      %p240 = scmp.eq.s32.totalorder %s32, 7
      %p241 = por %p239, %p240
      %p242 = scmp.ne.s32.totalorder %s233, %s234
      %p243 = scmp.eq.s32.totalorder %s32, 0
      %p244 = por %p242, %p243
      %p245 = scmp.ne.s32.totalorder %s233, %s234
      %p246 = scmp.eq.s32.totalorder %s33, 7
      %p247 = por %p245, %p246
      %p249 = scmp.ne.s32.totalorder %s234, %s248
      %p250 = scmp.eq.s32.totalorder %s33, 0
      %p251 = por %p249, %p250
      %s253 = sadd.s32 %s252, 1
      %p256 = scmp.eq.s32.totalorder %s27, 7
      %p257 = scmp.ne.s32.totalorder %s252, %s254
      %p258 = scmp.eq.s32.totalorder %s27, 0
      %p259 = por %p257, %p258
      %p260 = scmp.ne.s32.totalorder %s252, %s254
      %p261 = scmp.eq.s32.totalorder %s32, 7
      %p262 = por %p260, %p261
      %p263 = scmp.ne.s32.totalorder %s254, %s255
      %p264 = scmp.eq.s32.totalorder %s32, 0
      %p265 = por %p263, %p264
      %p266 = scmp.ne.s32.totalorder %s254, %s255
      %p267 = scmp.eq.s32.totalorder %s33, 7
      %p268 = por %p266, %p267
      %p270 = scmp.ne.s32.totalorder %s255, %s269
      %p271 = scmp.eq.s32.totalorder %s33, 0
      %p272 = por %p270, %p271
      %s274 = sadd.s32 %s273, 1
      %p277 = scmp.eq.s32.totalorder %s27, 7
      %p278 = scmp.ne.s32.totalorder %s273, %s275
      %p279 = scmp.eq.s32.totalorder %s27, 0
      %p280 = por %p278, %p279
      %p281 = scmp.ne.s32.totalorder %s273, %s275
      %p282 = scmp.eq.s32.totalorder %s32, 7
      %p283 = por %p281, %p282
      %p284 = scmp.ne.s32.totalorder %s275, %s276
      %p285 = scmp.eq.s32.totalorder %s32, 0
      %p286 = por %p284, %p285
      %p287 = scmp.ne.s32.totalorder %s275, %s276
      %p288 = scmp.eq.s32.totalorder %s33, 7
      %p289 = por %p287, %p288
      %p291 = scmp.ne.s32.totalorder %s276, %s290
      %p292 = scmp.eq.s32.totalorder %s33, 0
      %p293 = por %p291, %p292
      %s295 = sadd.s32 %s294, 1
      %p298 = scmp.eq.s32.totalorder %s27, 7
      %p299 = scmp.ne.s32.totalorder %s294, %s296
      %p300 = scmp.eq.s32.totalorder %s27, 0
      %p301 = por %p299, %p300
      %p302 = scmp.ne.s32.totalorder %s294, %s296
      %p303 = scmp.eq.s32.totalorder %s32, 7
      %p304 = por %p302, %p303
      %p305 = scmp.ne.s32.totalorder %s296, %s297
      %p306 = scmp.eq.s32.totalorder %s32, 0
      %p307 = por %p305, %p306
      %p308 = scmp.ne.s32.totalorder %s296, %s297
      %p309 = scmp.eq.s32.totalorder %s33, 7
      %p310 = por %p308, %p309
      %p312 = scmp.ne.s32.totalorder %s297, %s311
      %p313 = scmp.eq.s32.totalorder %s33, 0
      %p314 = por %p312, %p313
      %s316 = sadd.s32 %s315, 1
      %p319 = scmp.eq.s32.totalorder %s27, 7
      %p320 = scmp.ne.s32.totalorder %s315, %s317
      %p321 = scmp.eq.s32.totalorder %s27, 0
      %p322 = por %p320, %p321
      %p323 = scmp.ne.s32.totalorder %s315, %s317
      %p324 = scmp.eq.s32.totalorder %s32, 7
      %p325 = por %p323, %p324
      %p326 = scmp.ne.s32.totalorder %s317, %s318
      %p327 = scmp.eq.s32.totalorder %s32, 0
      %p328 = por %p326, %p327
      %p329 = scmp.ne.s32.totalorder %s317, %s318
      %p330 = scmp.eq.s32.totalorder %s33, 7
      %p331 = por %p329, %p330
      %p333 = scmp.ne.s32.totalorder %s318, %s332
      %p334 = scmp.eq.s32.totalorder %s33, 0
      %p335 = por %p333, %p334
      %s336 = ssub.s32 %s34, %s46
      %s337 = ssub.s32 %s35, %s42
      %s338 = sor.u32 %s336, %s337
      %p339 = scmp.eq.s32.totalorder %s338, 0
      %s341 = sadd.s32 %s340, 1
      %s342 = scalar_select %p339, %s340, %s341
      %p345 = pneg %p339
      %p346 = scmp.eq.s32.totalorder %s27, 7
      %p347 = por %p345, %p346
      %p348 = scmp.ne.s32.totalorder %s340, %s343
      %p349 = scmp.eq.s32.totalorder %s27, 0
      %p350 = por %p348, %p349
      %p351 = scmp.ne.s32.totalorder %s340, %s343
      %p352 = scmp.eq.s32.totalorder %s32, 7
      %p353 = por %p351, %p352
      %p354 = scmp.ne.s32.totalorder %s343, %s344
      %p355 = scmp.eq.s32.totalorder %s32, 0
      %p356 = por %p354, %p355
      %p357 = scmp.ne.s32.totalorder %s343, %s344
      %p358 = scmp.eq.s32.totalorder %s33, 7
      %p359 = por %p357, %p358
      %p361 = scmp.ne.s32.totalorder %s344, %s360
      %p362 = scmp.eq.s32.totalorder %s33, 0
      %p363 = por %p361, %p362
      %p364 = scmp.le.s32.totalorder 1, %s27
      %p365 = scmp.lt.s32.totalorder %s27, 9
      %p366 = pnand %p364, %p365
      %p367 = pneg %p366
      // Predicated region
      $region9: #{tpu_custom_call.1} parent=5 // pred_check
        _
      $region10: #{tpu_custom_call.1} parent=5 // pred_check_branch
        %369 = sbr.rel (%p366) target = $region12
      $region11: #{tpu_custom_call.1} parent=5 // pred_region
        %s370 = ssub.s32 %s27, 1
        // Predicated region
        $region13: #{tpu_custom_call.1} parent=11 // pred_check
          %p371 = pneg %p160
        $region14: #{tpu_custom_call.1} parent=11 // pred_check_branch
          %373 = sbr.rel (%p371) target = $region16
        $region15: #{tpu_custom_call.1} parent=11 // pred_region
          _
        $region16: #{tpu_custom_call.1} parent=11 // pred_fallthru
          _
        // Predicated region
        $region17: #{tpu_custom_call.1} parent=11 // pred_check
          %p374 = pneg %p181
        $region18: #{tpu_custom_call.1} parent=11 // pred_check_branch
          %376 = sbr.rel (%p374) target = $region20
        $region19: #{tpu_custom_call.1} parent=11 // pred_region
          _
        $region20: #{tpu_custom_call.1} parent=11 // pred_fallthru
          _
        // Predicated region
        $region21: #{tpu_custom_call.1} parent=11 // pred_check
          %p377 = pneg %p202
        $region22: #{tpu_custom_call.1} parent=11 // pred_check_branch
          %379 = sbr.rel (%p377) target = $region24
        $region23: #{tpu_custom_call.1} parent=11 // pred_region
          _
        $region24: #{tpu_custom_call.1} parent=11 // pred_fallthru
          _
        // Predicated region
        $region25: #{tpu_custom_call.1} parent=11 // pred_check
          %p380 = pneg %p223
        $region26: #{tpu_custom_call.1} parent=11 // pred_check_branch
          %382 = sbr.rel (%p380) target = $region28
        $region27: #{tpu_custom_call.1} parent=11 // pred_region
          _
        $region28: #{tpu_custom_call.1} parent=11 // pred_fallthru
          _
        // Predicated region
        $region29: #{tpu_custom_call.1} parent=11 // pred_check
          %p383 = pneg %p244
        $region30: #{tpu_custom_call.1} parent=11 // pred_check_branch
          %385 = sbr.rel (%p383) target = $region32
        $region31: #{tpu_custom_call.1} parent=11 // pred_region
          _
        $region32: #{tpu_custom_call.1} parent=11 // pred_fallthru
          _
        // Predicated region
        $region33: #{tpu_custom_call.1} parent=11 // pred_check
          %p386 = pneg %p265
        $region34: #{tpu_custom_call.1} parent=11 // pred_check_branch
          %388 = sbr.rel (%p386) target = $region36
        $region35: #{tpu_custom_call.1} parent=11 // pred_region
          _
        $region36: #{tpu_custom_call.1} parent=11 // pred_fallthru
          _
        // Predicated region
        $region37: #{tpu_custom_call.1} parent=11 // pred_check
          %p389 = pneg %p286
        $region38: #{tpu_custom_call.1} parent=11 // pred_check_branch
          %391 = sbr.rel (%p389) target = $region40
        $region39: #{tpu_custom_call.1} parent=11 // pred_region
          _
        $region40: #{tpu_custom_call.1} parent=11 // pred_fallthru
          _
        // Predicated region
        $region41: #{tpu_custom_call.1} parent=11 // pred_check
          %p392 = pneg %p307
        $region42: #{tpu_custom_call.1} parent=11 // pred_check_branch
          %394 = sbr.rel (%p392) target = $region44
        $region43: #{tpu_custom_call.1} parent=11 // pred_region
          _
        $region44: #{tpu_custom_call.1} parent=11 // pred_fallthru
          _
        // Predicated region
        $region45: #{tpu_custom_call.1} parent=11 // pred_check
          %p395 = pneg %p328
        $region46: #{tpu_custom_call.1} parent=11 // pred_check_branch
          %397 = sbr.rel (%p395) target = $region48
        $region47: #{tpu_custom_call.1} parent=11 // pred_region
          _
        $region48: #{tpu_custom_call.1} parent=11 // pred_fallthru
          _
      $region12: #{tpu_custom_call.1} parent=5 // pred_fallthru
        _
      %p398 = scmp.lt.s32.totalorder %s27, 8
      // Predicated region
      $region49: #{tpu_custom_call.1} parent=5 // pred_check
        %p399 = pneg %p398
      $region50: #{tpu_custom_call.1} parent=5 // pred_check_branch
        %401 = sbr.rel (%p399) target = $region52
      $region51: #{tpu_custom_call.1} parent=5 // pred_region
        // Predicated region
        $region53: #{tpu_custom_call.1} parent=51 // pred_check
          %p402 = pneg %p61
        $region54: #{tpu_custom_call.1} parent=51 // pred_check_branch
          %404 = sbr.rel (%p402) target = $region56
        $region55: #{tpu_custom_call.1} parent=51 // pred_region
          %s405 = sand.u32 %s51, 1
          %s406 = scalar_lea.sflag [#allocation3], %s405
          %s407 = sand.u32 %s51, 1
          %s408 = smul.addr %s407, 64
          %s409 = scalar_lea.vmem [#allocation2], %s408
          %s410 = smul.u32 4, %s35
          %s412 = ssub.s32 1024, 1024
          %413 = vsyncadd %s406, %s412
          %s414 = smul.addr %s410, 2
          %s415 = smul.addr %s34, 32
          %s416 = sadd.s32 %s414, %s415
          %s417 = smul.addr %s416, 128
          %s418 = scalar_lea.hbm %s0, %s417
          %s419 = sshll.u32 %s409, 4
          %s420 = int_to_ptr.vmem [resolvable:$true] %s419
          %425 = dma.hbm_to_vmem [thread:$0]  %s418, 1024, %s420, %s406, 128, 128, 8
        $region56: #{tpu_custom_call.1} parent=51 // pred_fallthru
          _
        // Predicated region
        $region57: #{tpu_custom_call.1} parent=51 // pred_check
          %p426 = pneg %p97
        $region58: #{tpu_custom_call.1} parent=51 // pred_check_branch
          %428 = sbr.rel (%p426) target = $region60
        $region59: #{tpu_custom_call.1} parent=51 // pred_region
          %s429 = sand.u32 %s27, 1
          %s430 = scalar_lea.sflag [#allocation6], %s429
          %s431 = sand.u32 %s87, 1
          %s432 = smul.addr %s431, 16
          %s433 = scalar_lea.vmem [#allocation5], %s432
          %s434 = smul.u32 %s35, 4
          %s435 = ssub.s32 %s434, 1
          %p436 = scmp.gt.s32.totalorder %s435, 0
          %s437 = scalar_select %p436, %s435, 0
          %s439 = ssub.s32 256, 256
          %440 = vsyncadd %s430, %s439
          %s441 = smul.addr %s437, 2
          %s442 = smul.addr %s34, 32
          %s443 = sadd.s32 %s441, %s442
          %s444 = smul.addr %s443, 128
          %s445 = scalar_lea.hbm %s1, %s444
          %s446 = sshll.u32 %s433, 4
          %s447 = int_to_ptr.vmem [resolvable:$true] %s446
          %452 = dma.hbm_to_vmem [thread:$0]  %s445, 256, %s447, %s430, 128, 128, 8
        $region60: #{tpu_custom_call.1} parent=51 // pred_fallthru
          _
        // Predicated region
        $region61: #{tpu_custom_call.1} parent=51 // pred_check
          %p453 = pneg %p133
        $region62: #{tpu_custom_call.1} parent=51 // pred_check_branch
          %455 = sbr.rel (%p453) target = $region64
        $region63: #{tpu_custom_call.1} parent=51 // pred_region
          %s456 = sand.u32 %s27, 1
          %s457 = scalar_lea.sflag [#allocation6], %s456
          %s458 = sand.u32 %s123, 1
          %s459 = smul.addr %s458, 16
          %s460 = scalar_lea.vmem [#allocation7], %s459
          %s461 = smul.u32 %s35, 4
          %s462 = sadd.s32 %s461, 4
          %p463 = scmp.lt.s32.totalorder %s462, 15
          %s464 = scalar_select %p463, %s462, 15
          %s466 = ssub.s32 256, 256
          %467 = vsyncadd %s457, %s466
          %s468 = smul.addr %s464, 2
          %s469 = smul.addr %s34, 32
          %s470 = sadd.s32 %s468, %s469
          %s471 = smul.addr %s470, 128
          %s472 = scalar_lea.hbm %s2, %s471
          %s473 = sshll.u32 %s460, 4
          %s474 = int_to_ptr.vmem [resolvable:$true] %s473
          %479 = dma.hbm_to_vmem [thread:$0]  %s472, 256, %s474, %s457, 128, 128, 8
        $region64: #{tpu_custom_call.1} parent=51 // pred_fallthru
          _
      $region52: #{tpu_custom_call.1} parent=5 // pred_fallthru
        _
      %p480 = scmp.le.s32.totalorder 1, %s27
      %p481 = scmp.lt.s32.totalorder %s27, 9
      %p482 = pnand %p480, %p481
      %p483 = pneg %p482
      // Predicated region
      $region65: #{tpu_custom_call.1} parent=5 // pred_check
        _
      $region66: #{tpu_custom_call.1} parent=5 // pred_check_branch
        %485 = sbr.rel (%p482) target = $region68
      $region67: #{tpu_custom_call.1} parent=5 // pred_region
        %s486 = ssub.s32 %s27, 1
        %s487 = sand.u32 %s54, 1
        %s488 = scalar_lea.sflag [#allocation3], %s487
        %s489 = sand.u32 %s54, 1
        %s490 = smul.addr %s489, 64
        %s491 = scalar_lea.vmem [#allocation2], %s490
        // Predicated region
        $region69: #{tpu_custom_call.1} parent=67 // pred_check
          %p492 = pneg %p67
        $region70: #{tpu_custom_call.1} parent=67 // pred_check_branch
          %494 = sbr.rel (%p492) target = $region72
        $region71: #{tpu_custom_call.1} parent=67 // pred_region
          %495 = dma.done %s488, 1024
        $region72: #{tpu_custom_call.1} parent=67 // pred_fallthru
          _
        %s496 = sand.u32 %s32, 1
        %s497 = scalar_lea.sflag [#allocation6], %s496
        %s498 = sand.u32 %s90, 1
        %s499 = smul.addr %s498, 16
        %s500 = scalar_lea.vmem [#allocation5], %s499
        // Predicated region
        $region73: #{tpu_custom_call.1} parent=67 // pred_check
          %p501 = pneg %p103
        $region74: #{tpu_custom_call.1} parent=67 // pred_check_branch
          %503 = sbr.rel (%p501) target = $region76
        $region75: #{tpu_custom_call.1} parent=67 // pred_region
          %504 = dma.done %s497, 256
        $region76: #{tpu_custom_call.1} parent=67 // pred_fallthru
          _
        %s505 = sand.u32 %s32, 1
        %s506 = scalar_lea.sflag [#allocation6], %s505
        %s507 = sand.u32 %s126, 1
        %s508 = smul.addr %s507, 16
        %s509 = scalar_lea.vmem [#allocation7], %s508
        // Predicated region
        $region77: #{tpu_custom_call.1} parent=67 // pred_check
          %p510 = pneg %p139
        $region78: #{tpu_custom_call.1} parent=67 // pred_check_branch
          %512 = sbr.rel (%p510) target = $region80
        $region79: #{tpu_custom_call.1} parent=67 // pred_region
          %513 = dma.done %s506, 256
        $region80: #{tpu_custom_call.1} parent=67 // pred_fallthru
          _
        %s514 = sand.u32 %s54, 1
        %s515 = scalar_lea.sflag [#allocation3], %s514
        %s516 = sand.u32 %s54, 1
        %s517 = smul.addr %s516, 64
        %s518 = scalar_lea.vmem [#allocation2], %s517
        %p519 = pneg %p67
        %p520 = pneg %p64
        %s521 = sand.u32 %s32, 1
        %s522 = scalar_lea.sflag [#allocation6], %s521
        %s523 = sand.u32 %s90, 1
        %s524 = smul.addr %s523, 16
        %s525 = scalar_lea.vmem [#allocation5], %s524
        %p526 = pneg %p103
        %p527 = pneg %p100
        %s528 = sand.u32 %s32, 1
        %s529 = scalar_lea.sflag [#allocation6], %s528
        %s530 = sand.u32 %s126, 1
        %s531 = smul.addr %s530, 16
        %s532 = scalar_lea.vmem [#allocation7], %s531
        %p533 = pneg %p139
        %p534 = pneg %p136
        %p535 = pneg %p160
        %p536 = pneg %p157
        %p537 = pneg %p181
        %p538 = pneg %p178
        %p539 = pneg %p202
        %p540 = pneg %p199
        %p541 = pneg %p223
        %p542 = pneg %p220
        %p543 = pneg %p244
        %p544 = pneg %p241
        %p545 = pneg %p265
        %p546 = pneg %p262
        %p547 = pneg %p286
        %p548 = pneg %p283
        %p549 = pneg %p307
        %p550 = pneg %p304
        %p551 = pneg %p328
        %p552 = pneg %p325
        %p553 = pneg %p356
        %p554 = pneg %p353
        %s555 = sand.u32 %s343, 1
        %s556 = scalar_lea.sflag [#allocation4], %s555
        %s557 = sand.u32 %s343, 1
        %s558 = smul.addr %s557, 64
        %s559 = scalar_lea.vmem [#allocation8], %s558
        %s560 = smul.u32 4, %s37
        %s561 = smul.u32 %s37, 4
        %s562 = ssub.s32 %s561, 1
        %p563 = scmp.gt.s32.totalorder %s562, 0
        %s564 = scalar_select %p563, %s562, 0
        %s565 = smul.u32 %s37, 4
        %s566 = sadd.s32 %s565, 4
        %p567 = scmp.lt.s32.totalorder %s566, 15
        %s568 = scalar_select %p567, %s566, 15
        %s569 = smul.u32 4, %s37
        %v571 = vld [vmem:[%s500] sm:$0xff]
        %v572 = vld [vmem:[%s500 + $0x8] sm:$0xff]
        %v573 = vld [vmem:[%s491] sm:$0xff]
        %v574 = vld [vmem:[%s491 + $0x8] sm:$0xff]
        %v575 = vld [vmem:[%s491 + $0x10] sm:$0xff]
        %v576 = vld [vmem:[%s491 + $0x18] sm:$0xff]
        %v577 = vld [vmem:[%s491 + $0x20] sm:$0xff]
        %v578 = vld [vmem:[%s491 + $0x28] sm:$0xff]
        %v579 = vld [vmem:[%s491 + $0x30] sm:$0xff]
        %v580 = vld [vmem:[%s491 + $0x38] sm:$0xff]
        %v581 = vld [vmem:[%s509] sm:$0xff]
        %v582 = vld [vmem:[%s509 + $0x8] sm:$0xff]
        %v583 = vpack.c.bf16 %v572, %v571
        %v584 = vpack.c.bf16 %v574, %v573
        %v585 = vpack.c.bf16 %v576, %v575
        %v586 = vpack.c.bf16 %v578, %v577
        %v587 = vpack.c.bf16 %v580, %v579
        %v588 = vpack.c.bf16 %v582, %v581
        %v589 = vld [vmem:[%s3] sm:$0xf]
        %v590 = vld [vmem:[%s3 + $0x4] sm:$0xf]
        %v593 = vunpack.c.l.b16 %v589
        %v594 = vunpack.c.l.b16 %v590
        %v595 = vpack.c.b16 %v594, %v593
        %vm597 = vcmask 130048
        %v599 = vsel %vm597, %v583, 0
        %v602 = vsel %vm597, %v584, 0
        %v605 = vsel %vm597, %v585, 0
        %v608 = vsel %vm597, %v586, 0
        %v611 = vsel %vm597, %v587, 0
        %v614 = vsel %vm597, %v588, 0
        %616 = vmatprep.subr.bf16.mxu0 0
        %617 = vmatpush1.bf16.msra.mxu0 %v595
        %618 = vmatprep.subr.bf16.mxu0 0
        %619 = vmatpush1.bf16.msra.mxu0 0
        %620 = vmatprep.subr.bf16.mxu0 0
        %621 = vmatpush1.bf16.msra.mxu0 0
        %622 = vmatprep.subr.bf16.mxu0 0
        %623 = vmatpush1.bf16.msra.mxu0 0
        %624 = vmatprep.subr.bf16.mxu0 0
        %625 = vmatpush1.bf16.msra.mxu0 0
        %626 = vmatprep.subr.bf16.mxu0 0
        %627 = vmatpush1.bf16.msra.mxu0 0
        %628 = vmatprep.subr.bf16.mxu0 0
        %629 = vmatpush1.bf16.msra.mxu0 0
        %630 = vmatprep.subr.bf16.mxu0 0
        %631 = vmatpush1.bf16.msra.mxu0 0
        %632 = vmatprep.subr.bf16.mxu0 0
        %633 = vmatpush1.bf16.msra.mxu0 0
        %634 = vmatprep.subr.bf16.mxu0 0
        %635 = vmatpush1.bf16.msra.mxu0 0
        %636 = vmatprep.subr.bf16.mxu0 0
        %637 = vmatpush1.bf16.msra.mxu0 0
        %638 = vmatprep.subr.bf16.mxu0 0
        %639 = vmatpush1.bf16.msra.mxu0 0
        %640 = vmatprep.subr.bf16.mxu0 0
        %641 = vmatpush1.bf16.msra.mxu0 0
        %642 = vmatprep.subr.bf16.mxu0 0
        %643 = vmatpush1.bf16.msra.mxu0 0
        %644 = vmatprep.subr.bf16.mxu0 0
        %645 = vmatpush1.bf16.msra.mxu0 0
        %646 = vmatprep.subr.bf16.mxu0 0
        %647 = vmatpush1.bf16.msra.mxu0 0
        %648 = vmatprep.mubr.bf16.mxu0 0
        %649 = vmatmul.mubr.bf16.gmra.mrb[0].mxu0 %v599
        %v650 = vpop.f32.mrb[0].mxu0
        %v651 = vadd.f32 0.0, %v650
        %v652 = vpop.f32.mrb[0].mxu0
        %v653 = vpop.f32.mrb[0].mxu0
        %v654 = vadd.f32 0.0, %v653
        %v655 = vpop.f32.mrb[0].mxu0
        %656 = vmatprep.mubr.bf16.mxu0 0
        %657 = vmatmul.mubr.bf16.gmra.mrb[0].mxu0 %v602
        %v658 = vpop.f32.mrb[0].mxu0
        %v659 = vadd.f32 0.0, %v658
        %v660 = vpop.f32.mrb[0].mxu0
        %v661 = vpop.f32.mrb[0].mxu0
        %v662 = vadd.f32 0.0, %v661
        %v663 = vpop.f32.mrb[0].mxu0
        %664 = vmatprep.mubr.bf16.mxu0 0
        %665 = vmatmul.mubr.bf16.gmra.mrb[0].mxu0 %v605
        %v666 = vpop.f32.mrb[0].mxu0
        %v667 = vadd.f32 0.0, %v666
        %v668 = vpop.f32.mrb[0].mxu0
        %v669 = vpop.f32.mrb[0].mxu0
        %v670 = vadd.f32 0.0, %v669
        %v671 = vpop.f32.mrb[0].mxu0
        %672 = vmatprep.mubr.bf16.mxu0 0
        %673 = vmatmul.mubr.bf16.gmra.mrb[0].mxu0 %v608
        %v674 = vpop.f32.mrb[0].mxu0
        %v675 = vadd.f32 0.0, %v674
        %v676 = vpop.f32.mrb[0].mxu0
        %v677 = vpop.f32.mrb[0].mxu0
        %v678 = vadd.f32 0.0, %v677
        %v679 = vpop.f32.mrb[0].mxu0
        %680 = vmatprep.mubr.bf16.mxu0 0
        %681 = vmatmul.mubr.bf16.gmra.mrb[0].mxu0 %v611
        %v682 = vpop.f32.mrb[0].mxu0
        %v683 = vadd.f32 0.0, %v682
        %v684 = vpop.f32.mrb[0].mxu0
        %v685 = vpop.f32.mrb[0].mxu0
        %v686 = vadd.f32 0.0, %v685
        %v687 = vpop.f32.mrb[0].mxu0
        %688 = vmatprep.mubr.bf16.mxu0 0
        %689 = vmatmul.mubr.bf16.gmra.mrb[0].mxu0 %v614
        %v690 = vpop.f32.mrb[0].mxu0
        %v691 = vadd.f32 0.0, %v690
        %v692 = vpop.f32.mrb[0].mxu0
        %v693 = vpop.f32.mrb[0].mxu0
        %v694 = vadd.f32 0.0, %v693
        %v695 = vpop.f32.mrb[0].mxu0
        %696 = vdwg.mxu0
        %v697 = vld [vmem:[%s4] sm:$0x1]
        %v699 = vlaneseq
        %v700 = vshrl.u32 %v699, 7
        %v701 = vsub.s32 0, %v700
        %v702 = vrot.slane %v697, %v701
        %v704 = vmul.f32 %v651, %v702
        %v705 = vmul.f32 %v654, %v702
        %v706 = vmul.f32 %v659, %v702
        %v707 = vmul.f32 %v662, %v702
        %v708 = vmul.f32 %v667, %v702
        %v709 = vmul.f32 %v670, %v702
        %v710 = vmul.f32 %v675, %v702
        %v711 = vmul.f32 %v678, %v702
        %v712 = vmul.f32 %v683, %v702
        %v713 = vmul.f32 %v686, %v702
        %v714 = vmul.f32 %v691, %v702
        %v715 = vmul.f32 %v694, %v702
        %v716 = vld [vmem:[%s5] sm:$0x1]
        %v718 = vlaneseq
        %v719 = vshrl.u32 %v718, 7
        %v720 = vsub.s32 0, %v719
        %v721 = vrot.slane %v716, %v720
        %v723 = vadd.f32 %v704, %v721
        %v724 = vadd.f32 %v705, %v721
        %v725 = vadd.f32 %v706, %v721
        %v726 = vadd.f32 %v707, %v721
        %v727 = vadd.f32 %v708, %v721
        %v728 = vadd.f32 %v709, %v721
        %v729 = vadd.f32 %v710, %v721
        %v730 = vadd.f32 %v711, %v721
        %v731 = vadd.f32 %v712, %v721
        %v732 = vadd.f32 %v713, %v721
        %v733 = vadd.f32 %v714, %v721
        %v734 = vadd.f32 %v715, %v721
        %v735 = vmax.f32 %v723, 0.0
        %v736 = vmax.f32 %v724, 0.0
        %v737 = vmax.f32 %v725, 0.0
        %v738 = vmax.f32 %v726, 0.0
        %v739 = vmax.f32 %v727, 0.0
        %v740 = vmax.f32 %v728, 0.0
        %v741 = vmax.f32 %v729, 0.0
        %v742 = vmax.f32 %v730, 0.0
        %v743 = vmax.f32 %v731, 0.0
        %v744 = vmax.f32 %v732, 0.0
        %v745 = vmax.f32 %v733, 0.0
        %v746 = vmax.f32 %v734, 0.0
        %v747 = vlaneseq
        %v748 = vshrl.u32 %v747, 7
        %v749 = vadd.s32 %v748, 8
        %v750 = vadd.s32 %v748, 16
        %v751 = vadd.s32 %v748, 24
        %v752 = vadd.s32 %v748, 32
        %v753 = vadd.s32 %v748, 40
        %v754 = vadd.s32 %v748, 48
        %v755 = vadd.s32 %v748, 56
        %v756 = vadd.s32 %v748, 64
        %v757 = vadd.s32 %v748, 72
        %v758 = vadd.s32 %v748, 80
        %v759 = vadd.s32 %v748, 88
        %vm760 = vcmp.lt.s32.totalorder %v748, 0
        %v761 = vsub.s32 0, %v748
        %v762 = vsel %vm760, %v761, %v748
        %v763 = vshrl.u32 %v762, 4
        %v764 = vand.u32 %v762, 15
        %v765 = vsub.s32 0, %v764
        %v766 = vsel %vm760, %v765, %v764
        %vm767 = vcmp.lt.s32.totalorder %v749, 0
        %v768 = vsub.s32 0, %v749
        %v769 = vsel %vm767, %v768, %v749
        %v770 = vshrl.u32 %v769, 4
        %v771 = vand.u32 %v769, 15
        %v772 = vsub.s32 0, %v771
        %v773 = vsel %vm767, %v772, %v771
        %vm774 = vcmp.lt.s32.totalorder %v750, 0
        %v775 = vsub.s32 0, %v750
        %v776 = vsel %vm774, %v775, %v750
        %v777 = vshrl.u32 %v776, 4
        %v778 = vand.u32 %v776, 15
        %v779 = vsub.s32 0, %v778
        %v780 = vsel %vm774, %v779, %v778
        %vm781 = vcmp.lt.s32.totalorder %v751, 0
        %v782 = vsub.s32 0, %v751
        %v783 = vsel %vm781, %v782, %v751
        %v784 = vshrl.u32 %v783, 4
        %v785 = vand.u32 %v783, 15
        %v786 = vsub.s32 0, %v785
        %v787 = vsel %vm781, %v786, %v785
        %vm788 = vcmp.lt.s32.totalorder %v752, 0
        %v789 = vsub.s32 0, %v752
        %v790 = vsel %vm788, %v789, %v752
        %v791 = vshrl.u32 %v790, 4
        %v792 = vand.u32 %v790, 15
        %v793 = vsub.s32 0, %v792
        %v794 = vsel %vm788, %v793, %v792
        %vm795 = vcmp.lt.s32.totalorder %v753, 0
        %v796 = vsub.s32 0, %v753
        %v797 = vsel %vm795, %v796, %v753
        %v798 = vshrl.u32 %v797, 4
        %v799 = vand.u32 %v797, 15
        %v800 = vsub.s32 0, %v799
        %v801 = vsel %vm795, %v800, %v799
        %vm802 = vcmp.lt.s32.totalorder %v754, 0
        %v803 = vsub.s32 0, %v754
        %v804 = vsel %vm802, %v803, %v754
        %v805 = vshrl.u32 %v804, 4
        %v806 = vand.u32 %v804, 15
        %v807 = vsub.s32 0, %v806
        %v808 = vsel %vm802, %v807, %v806
        %vm809 = vcmp.lt.s32.totalorder %v755, 0
        %v810 = vsub.s32 0, %v755
        %v811 = vsel %vm809, %v810, %v755
        %v812 = vshrl.u32 %v811, 4
        %v813 = vand.u32 %v811, 15
        %v814 = vsub.s32 0, %v813
        %v815 = vsel %vm809, %v814, %v813
        %vm816 = vcmp.lt.s32.totalorder %v756, 0
        %v817 = vsub.s32 0, %v756
        %v818 = vsel %vm816, %v817, %v756
        %v819 = vshrl.u32 %v818, 4
        %v820 = vand.u32 %v818, 15
        %v821 = vsub.s32 0, %v820
        %v822 = vsel %vm816, %v821, %v820
        %vm823 = vcmp.lt.s32.totalorder %v757, 0
        %v824 = vsub.s32 0, %v757
        %v825 = vsel %vm823, %v824, %v757
        %v826 = vshrl.u32 %v825, 4
        %v827 = vand.u32 %v825, 15
        %v828 = vsub.s32 0, %v827
        %v829 = vsel %vm823, %v828, %v827
        %vm830 = vcmp.lt.s32.totalorder %v758, 0
        %v831 = vsub.s32 0, %v758
        %v832 = vsel %vm830, %v831, %v758
        %v833 = vshrl.u32 %v832, 4
        %v834 = vand.u32 %v832, 15
        %v835 = vsub.s32 0, %v834
        %v836 = vsel %vm830, %v835, %v834
        %vm837 = vcmp.lt.s32.totalorder %v759, 0
        %v838 = vsub.s32 0, %v759
        %v839 = vsel %vm837, %v838, %v759
        %v840 = vshrl.u32 %v839, 4
        %v841 = vand.u32 %v839, 15
        %v842 = vsub.s32 0, %v841
        %v843 = vsel %vm837, %v842, %v841
        %vm844 = vcmp.ne.s32.totalorder %v766, 0
        %vm845 = vcmp.ne.s32.totalorder %v773, 0
        %vm846 = vcmp.ne.s32.totalorder %v780, 0
        %vm847 = vcmp.ne.s32.totalorder %v787, 0
        %vm848 = vcmp.ne.s32.totalorder %v794, 0
        %vm849 = vcmp.ne.s32.totalorder %v801, 0
        %vm850 = vcmp.ne.s32.totalorder %v808, 0
        %vm851 = vcmp.ne.s32.totalorder %v815, 0
        %vm852 = vcmp.ne.s32.totalorder %v822, 0
        %vm853 = vcmp.ne.s32.totalorder %v829, 0
        %vm854 = vcmp.ne.s32.totalorder %v836, 0
        %vm855 = vcmp.ne.s32.totalorder %v843, 0
        %vm856 = vcmp.lt.s32.totalorder %v766, 0
        %vm857 = vcmp.lt.s32.totalorder %v773, 0
        %vm858 = vcmp.lt.s32.totalorder %v780, 0
        %vm859 = vcmp.lt.s32.totalorder %v787, 0
        %vm860 = vcmp.lt.s32.totalorder %v794, 0
        %vm861 = vcmp.lt.s32.totalorder %v801, 0
        %vm862 = vcmp.lt.s32.totalorder %v808, 0
        %vm863 = vcmp.lt.s32.totalorder %v815, 0
        %vm864 = vcmp.lt.s32.totalorder %v822, 0
        %vm865 = vcmp.lt.s32.totalorder %v829, 0
        %vm866 = vcmp.lt.s32.totalorder %v836, 0
        %vm867 = vcmp.lt.s32.totalorder %v843, 0
        %vm868 = vmand %vm856, %vm844
        %vm869 = vmand %vm857, %vm845
        %vm870 = vmand %vm858, %vm846
        %vm871 = vmand %vm859, %vm847
        %vm872 = vmand %vm860, %vm848
        %vm873 = vmand %vm861, %vm849
        %vm874 = vmand %vm862, %vm850
        %vm875 = vmand %vm863, %vm851
        %vm876 = vmand %vm864, %vm852
        %vm877 = vmand %vm865, %vm853
        %vm878 = vmand %vm866, %vm854
        %vm879 = vmand %vm867, %vm855
        %v880 = vadd.s32 %v766, 16
        %v881 = vadd.s32 %v773, 16
        %v882 = vadd.s32 %v780, 16
        %v883 = vadd.s32 %v787, 16
        %v884 = vadd.s32 %v794, 16
        %v885 = vadd.s32 %v801, 16
        %v886 = vadd.s32 %v808, 16
        %v887 = vadd.s32 %v815, 16
        %v888 = vadd.s32 %v822, 16
        %v889 = vadd.s32 %v829, 16
        %v890 = vadd.s32 %v836, 16
        %v891 = vadd.s32 %v843, 16
        %v892 = vsel %vm868, %v880, %v766
        %v893 = vsel %vm869, %v881, %v773
        %v894 = vsel %vm870, %v882, %v780
        %v895 = vsel %vm871, %v883, %v787
        %v896 = vsel %vm872, %v884, %v794
        %v897 = vsel %vm873, %v885, %v801
        %v898 = vsel %vm874, %v886, %v808
        %v899 = vsel %vm875, %v887, %v815
        %v900 = vsel %vm876, %v888, %v822
        %v901 = vsel %vm877, %v889, %v829
        %v902 = vsel %vm878, %v890, %v836
        %v903 = vsel %vm879, %v891, %v843
        %p904 = scmp.eq.s32.totalorder %s37, 0
        %vm905 = vcmp.lt.s32.totalorder %v748, 16
        %vm906 = vcmp.lt.s32.totalorder %v749, 16
        %vm907 = vcmp.lt.s32.totalorder %v750, 16
        %vm908 = vcmp.lt.s32.totalorder %v751, 16
        %vm909 = vcmp.lt.s32.totalorder %v752, 16
        %vm910 = vcmp.lt.s32.totalorder %v753, 16
        %vm911 = vcmp.lt.s32.totalorder %v754, 16
        %vm912 = vcmp.lt.s32.totalorder %v755, 16
        %vm913 = vcmp.lt.s32.totalorder %v756, 16
        %vm914 = vcmp.lt.s32.totalorder %v757, 16
        %vm915 = vcmp.lt.s32.totalorder %v758, 16
        %vm916 = vcmp.lt.s32.totalorder %v759, 16
        %s917 = scalar_select %p904, 1, 0
        %v918 = vstv %s917
        %vm919 = vcmp.eq.s32.totalorder %v918, 1
        %vm920 = vmand %vm919, %vm905
        %vm921 = vmand %vm919, %vm906
        %vm922 = vmand %vm919, %vm907
        %vm923 = vmand %vm919, %vm908
        %vm924 = vmand %vm919, %vm909
        %vm925 = vmand %vm919, %vm910
        %vm926 = vmand %vm919, %vm911
        %vm927 = vmand %vm919, %vm912
        %vm928 = vmand %vm919, %vm913
        %vm929 = vmand %vm919, %vm914
        %vm930 = vmand %vm919, %vm915
        %vm931 = vmand %vm919, %vm916
        %p932 = scmp.eq.s32.totalorder %s37, 3
        %vm933 = vcmp.ge.s32.totalorder %v748, 80
        %vm934 = vcmp.ge.s32.totalorder %v749, 80
        %vm935 = vcmp.ge.s32.totalorder %v750, 80
        %vm936 = vcmp.ge.s32.totalorder %v751, 80
        %vm937 = vcmp.ge.s32.totalorder %v752, 80
        %vm938 = vcmp.ge.s32.totalorder %v753, 80
        %vm939 = vcmp.ge.s32.totalorder %v754, 80
        %vm940 = vcmp.ge.s32.totalorder %v755, 80
        %vm941 = vcmp.ge.s32.totalorder %v756, 80
        %vm942 = vcmp.ge.s32.totalorder %v757, 80
        %vm943 = vcmp.ge.s32.totalorder %v758, 80
        %vm944 = vcmp.ge.s32.totalorder %v759, 80
        %s945 = scalar_select %p932, 1, 0
        %v946 = vstv %s945
        %vm947 = vcmp.eq.s32.totalorder %v946, 1
        %vm948 = vmand %vm947, %vm933
        %vm949 = vmand %vm947, %vm934
        %vm950 = vmand %vm947, %vm935
        %vm951 = vmand %vm947, %vm936
        %vm952 = vmand %vm947, %vm937
        %vm953 = vmand %vm947, %vm938
        %vm954 = vmand %vm947, %vm939
        %vm955 = vmand %vm947, %vm940
        %vm956 = vmand %vm947, %vm941
        %vm957 = vmand %vm947, %vm942
        %vm958 = vmand %vm947, %vm943
        %vm959 = vmand %vm947, %vm944
        %vm960 = vmor %vm920, %vm948
        %vm961 = vmor %vm921, %vm949
        %vm962 = vmor %vm922, %vm950
        %vm963 = vmor %vm923, %vm951
        %vm964 = vmor %vm924, %vm952
        %vm965 = vmor %vm925, %vm953
        %vm966 = vmor %vm926, %vm954
        %vm967 = vmor %vm927, %vm955
        %vm968 = vmor %vm928, %vm956
        %vm969 = vmor %vm929, %vm957
        %vm970 = vmor %vm930, %vm958
        %vm971 = vmor %vm931, %vm959
        %v972 = vsel %vm960, 1, 0
        %v973 = vsel %vm961, 1, 0
        %v974 = vsel %vm962, 1, 0
        %v975 = vsel %vm963, 1, 0
        %v976 = vsel %vm964, 1, 0
        %v977 = vsel %vm965, 1, 0
        %v978 = vsel %vm966, 1, 0
        %v979 = vsel %vm967, 1, 0
        %v980 = vsel %vm968, 1, 0
        %v981 = vsel %vm969, 1, 0
        %v982 = vsel %vm970, 1, 0
        %v983 = vsel %vm971, 1, 0
        %vm984 = vcmp.eq.s32.totalorder %v972, 1
        %vm985 = vcmp.eq.s32.totalorder %v973, 1
        %vm986 = vcmp.eq.s32.totalorder %v974, 1
        %vm987 = vcmp.eq.s32.totalorder %v975, 1
        %vm988 = vcmp.eq.s32.totalorder %v976, 1
        %vm989 = vcmp.eq.s32.totalorder %v977, 1
        %vm990 = vcmp.eq.s32.totalorder %v978, 1
        %vm991 = vcmp.eq.s32.totalorder %v979, 1
        %vm992 = vcmp.eq.s32.totalorder %v980, 1
        %vm993 = vcmp.eq.s32.totalorder %v981, 1
        %vm994 = vcmp.eq.s32.totalorder %v982, 1
        %vm995 = vcmp.eq.s32.totalorder %v983, 1
        %v996 = vsel %vm984, 0.0, %v735
        %v997 = vsel %vm985, 0.0, %v736
        %v998 = vsel %vm986, 0.0, %v737
        %v999 = vsel %vm987, 0.0, %v738
        %v1000 = vsel %vm988, 0.0, %v739
        %v1001 = vsel %vm989, 0.0, %v740
        %v1002 = vsel %vm990, 0.0, %v741
        %v1003 = vsel %vm991, 0.0, %v742
        %v1004 = vsel %vm992, 0.0, %v743
        %v1005 = vsel %vm993, 0.0, %v744
        %v1006 = vsel %vm994, 0.0, %v745
        %v1007 = vsel %vm995, 0.0, %v746
        %vm1008 = vcmp.eq.s32.totalorder %v892, 0
        %vm1009 = vcmp.eq.s32.totalorder %v893, 0
        %vm1010 = vcmp.eq.s32.totalorder %v894, 0
        %vm1011 = vcmp.eq.s32.totalorder %v895, 0
        %vm1012 = vcmp.eq.s32.totalorder %v896, 0
        %vm1013 = vcmp.eq.s32.totalorder %v897, 0
        %vm1014 = vcmp.eq.s32.totalorder %v898, 0
        %vm1015 = vcmp.eq.s32.totalorder %v899, 0
        %vm1016 = vcmp.eq.s32.totalorder %v900, 0
        %vm1017 = vcmp.eq.s32.totalorder %v901, 0
        %vm1018 = vcmp.eq.s32.totalorder %v902, 0
        %vm1019 = vcmp.eq.s32.totalorder %v903, 0
        %v1020 = vrot.slane %v996, 7
        %v1021 = vrot.slane %v997, 7
        %v1022 = vrot.slane %v998, 7
        %v1023 = vrot.slane %v999, 7
        %v1024 = vrot.slane %v1000, 7
        %v1025 = vrot.slane %v1001, 7
        %v1026 = vrot.slane %v1002, 7
        %v1027 = vrot.slane %v1003, 7
        %v1028 = vrot.slane %v1004, 7
        %v1029 = vrot.slane %v1005, 7
        %v1030 = vrot.slane %v1006, 7
        %v1031 = vrot.slane %v1007, 7
        %vm1032 = vcmp.lt.s32.totalorder %v748, 1
        %v1033 = vsel %vm1032, %v1030, %v1031
        %v1034 = vsel %vm1032, %v1029, %v1030
        %v1035 = vsel %vm1032, %v1028, %v1029
        %v1036 = vsel %vm1032, %v1027, %v1028
        %v1037 = vsel %vm1032, %v1026, %v1027
        %v1038 = vsel %vm1032, %v1025, %v1026
        %v1039 = vsel %vm1032, %v1024, %v1025
        %v1040 = vsel %vm1032, %v1023, %v1024
        %v1041 = vsel %vm1032, %v1022, %v1023
        %v1042 = vsel %vm1032, %v1021, %v1022
        %v1043 = vsel %vm1032, %v1020, %v1021
        %v1044 = vsel %vm1032, %v1031, %v1020
        %v1045 = vsel %vm1008, 1, 0
        %v1046 = vsel %vm1009, 1, 0
        %v1047 = vsel %vm1010, 1, 0
        %v1048 = vsel %vm1011, 1, 0
        %v1049 = vsel %vm1012, 1, 0
        %v1050 = vsel %vm1013, 1, 0
        %v1051 = vsel %vm1014, 1, 0
        %v1052 = vsel %vm1015, 1, 0
        %v1053 = vsel %vm1016, 1, 0
        %v1054 = vsel %vm1017, 1, 0
        %v1055 = vsel %vm1018, 1, 0
        %v1056 = vsel %vm1019, 1, 0
        %vm1057 = vcmp.eq.s32.totalorder %v1045, 1
        %vm1058 = vcmp.eq.s32.totalorder %v1046, 1
        %vm1059 = vcmp.eq.s32.totalorder %v1047, 1
        %vm1060 = vcmp.eq.s32.totalorder %v1048, 1
        %vm1061 = vcmp.eq.s32.totalorder %v1049, 1
        %vm1062 = vcmp.eq.s32.totalorder %v1050, 1
        %vm1063 = vcmp.eq.s32.totalorder %v1051, 1
        %vm1064 = vcmp.eq.s32.totalorder %v1052, 1
        %vm1065 = vcmp.eq.s32.totalorder %v1053, 1
        %vm1066 = vcmp.eq.s32.totalorder %v1054, 1
        %vm1067 = vcmp.eq.s32.totalorder %v1055, 1
        %vm1068 = vcmp.eq.s32.totalorder %v1056, 1
        %v1069 = vsel %vm1057, 0.0, %v1044
        %v1070 = vsel %vm1058, 0.0, %v1043
        %v1071 = vsel %vm1059, 0.0, %v1042
        %v1072 = vsel %vm1060, 0.0, %v1041
        %v1073 = vsel %vm1061, 0.0, %v1040
        %v1074 = vsel %vm1062, 0.0, %v1039
        %v1075 = vsel %vm1063, 0.0, %v1038
        %v1076 = vsel %vm1064, 0.0, %v1037
        %v1077 = vsel %vm1065, 0.0, %v1036
        %v1078 = vsel %vm1066, 0.0, %v1035
        %v1079 = vsel %vm1067, 0.0, %v1034
        %v1080 = vsel %vm1068, 0.0, %v1033
        %vm1081 = vcmp.eq.s32.totalorder %v892, 15
        %vm1082 = vcmp.eq.s32.totalorder %v893, 15
        %vm1083 = vcmp.eq.s32.totalorder %v894, 15
        %vm1084 = vcmp.eq.s32.totalorder %v895, 15
        %vm1085 = vcmp.eq.s32.totalorder %v896, 15
        %vm1086 = vcmp.eq.s32.totalorder %v897, 15
        %vm1087 = vcmp.eq.s32.totalorder %v898, 15
        %vm1088 = vcmp.eq.s32.totalorder %v899, 15
        %vm1089 = vcmp.eq.s32.totalorder %v900, 15
        %vm1090 = vcmp.eq.s32.totalorder %v901, 15
        %vm1091 = vcmp.eq.s32.totalorder %v902, 15
        %vm1092 = vcmp.eq.s32.totalorder %v903, 15
        %v1093 = vrot.slane %v996, 1
        %v1094 = vrot.slane %v997, 1
        %v1095 = vrot.slane %v998, 1
        %v1096 = vrot.slane %v999, 1
        %v1097 = vrot.slane %v1000, 1
        %v1098 = vrot.slane %v1001, 1
        %v1099 = vrot.slane %v1002, 1
        %v1100 = vrot.slane %v1003, 1
        %v1101 = vrot.slane %v1004, 1
        %v1102 = vrot.slane %v1005, 1
        %v1103 = vrot.slane %v1006, 1
        %v1104 = vrot.slane %v1007, 1
        %vm1105 = vcmp.lt.s32.totalorder %v748, 7
        %v1106 = vsel %vm1105, %v1103, %v1104
        %v1107 = vsel %vm1105, %v1102, %v1103
        %v1108 = vsel %vm1105, %v1101, %v1102
        %v1109 = vsel %vm1105, %v1100, %v1101
        %v1110 = vsel %vm1105, %v1099, %v1100
        %v1111 = vsel %vm1105, %v1098, %v1099
        %v1112 = vsel %vm1105, %v1097, %v1098
        %v1113 = vsel %vm1105, %v1096, %v1097
        %v1114 = vsel %vm1105, %v1095, %v1096
        %v1115 = vsel %vm1105, %v1094, %v1095
        %v1116 = vsel %vm1105, %v1093, %v1094
        %v1117 = vsel %vm1105, %v1104, %v1093
        %v1118 = vsel %vm1081, 1, 0
        %v1119 = vsel %vm1082, 1, 0
        %v1120 = vsel %vm1083, 1, 0
        %v1121 = vsel %vm1084, 1, 0
        %v1122 = vsel %vm1085, 1, 0
        %v1123 = vsel %vm1086, 1, 0
        %v1124 = vsel %vm1087, 1, 0
        %v1125 = vsel %vm1088, 1, 0
        %v1126 = vsel %vm1089, 1, 0
        %v1127 = vsel %vm1090, 1, 0
        %v1128 = vsel %vm1091, 1, 0
        %v1129 = vsel %vm1092, 1, 0
        %vm1130 = vcmp.eq.s32.totalorder %v1118, 1
        %vm1131 = vcmp.eq.s32.totalorder %v1119, 1
        %vm1132 = vcmp.eq.s32.totalorder %v1120, 1
        %vm1133 = vcmp.eq.s32.totalorder %v1121, 1
        %vm1134 = vcmp.eq.s32.totalorder %v1122, 1
        %vm1135 = vcmp.eq.s32.totalorder %v1123, 1
        %vm1136 = vcmp.eq.s32.totalorder %v1124, 1
        %vm1137 = vcmp.eq.s32.totalorder %v1125, 1
        %vm1138 = vcmp.eq.s32.totalorder %v1126, 1
        %vm1139 = vcmp.eq.s32.totalorder %v1127, 1
        %vm1140 = vcmp.eq.s32.totalorder %v1128, 1
        %vm1141 = vcmp.eq.s32.totalorder %v1129, 1
        %v1142 = vsel %vm1130, 0.0, %v1116
        %v1143 = vsel %vm1131, 0.0, %v1115
        %v1144 = vsel %vm1132, 0.0, %v1114
        %v1145 = vsel %vm1133, 0.0, %v1113
        %v1146 = vsel %vm1134, 0.0, %v1112
        %v1147 = vsel %vm1135, 0.0, %v1111
        %v1148 = vsel %vm1136, 0.0, %v1110
        %v1149 = vsel %vm1137, 0.0, %v1109
        %v1150 = vsel %vm1138, 0.0, %v1108
        %v1151 = vsel %vm1139, 0.0, %v1107
        %v1152 = vsel %vm1140, 0.0, %v1106
        %v1153 = vsel %vm1141, 0.0, %v1117
        %v1154 = vld [vmem:[%s6] sm:$0xff]
        %v1155 = vld [vmem:[%s6 + $0x8] sm:$0x1]
        %v1156 = vlaneseq
        %v1157 = vshrl.u32 %v1156, 7
        %v1158 = vsub.s32 0, %v1157
        %v1159 = vrot.slane %v1154, %v1158
        %v1160 = vmul.f32 %v1069, %v1159
        %v1161 = vmul.f32 %v1070, %v1159
        %v1162 = vmul.f32 %v1071, %v1159
        %v1163 = vmul.f32 %v1072, %v1159
        %v1164 = vmul.f32 %v1073, %v1159
        %v1165 = vmul.f32 %v1074, %v1159
        %v1166 = vmul.f32 %v1075, %v1159
        %v1167 = vmul.f32 %v1076, %v1159
        %v1168 = vadd.f32 %v1160, 0.0
        %v1169 = vadd.f32 %v1161, 0.0
        %v1170 = vadd.f32 %v1162, 0.0
        %v1171 = vadd.f32 %v1163, 0.0
        %v1172 = vadd.f32 %v1164, 0.0
        %v1173 = vadd.f32 %v1165, 0.0
        %v1174 = vadd.f32 %v1166, 0.0
        %v1175 = vadd.f32 %v1167, 0.0
        %v1176 = vlaneseq
        %v1177 = vshrl.u32 %v1176, 7
        %v1178 = vsub.s32 1, %v1177
        %v1179 = vrot.slane %v1154, %v1178
        %v1180 = vmul.f32 %v996, %v1179
        %v1181 = vmul.f32 %v997, %v1179
        %v1182 = vmul.f32 %v998, %v1179
        %v1183 = vmul.f32 %v999, %v1179
        %v1184 = vmul.f32 %v1000, %v1179
        %v1185 = vmul.f32 %v1001, %v1179
        %v1186 = vmul.f32 %v1002, %v1179
        %v1187 = vmul.f32 %v1003, %v1179
        %v1188 = vadd.f32 %v1168, %v1180
        %v1189 = vadd.f32 %v1169, %v1181
        %v1190 = vadd.f32 %v1170, %v1182
        %v1191 = vadd.f32 %v1171, %v1183
        %v1192 = vadd.f32 %v1172, %v1184
        %v1193 = vadd.f32 %v1173, %v1185
        %v1194 = vadd.f32 %v1174, %v1186
        %v1195 = vadd.f32 %v1175, %v1187
        %v1196 = vlaneseq
        %v1197 = vshrl.u32 %v1196, 7
        %v1198 = vsub.s32 2, %v1197
        %v1199 = vrot.slane %v1154, %v1198
        %v1200 = vmul.f32 %v1142, %v1199
        %v1201 = vmul.f32 %v1143, %v1199
        %v1202 = vmul.f32 %v1144, %v1199
        %v1203 = vmul.f32 %v1145, %v1199
        %v1204 = vmul.f32 %v1146, %v1199
        %v1205 = vmul.f32 %v1147, %v1199
        %v1206 = vmul.f32 %v1148, %v1199
        %v1207 = vmul.f32 %v1149, %v1199
        %v1208 = vadd.f32 %v1188, %v1200
        %v1209 = vadd.f32 %v1189, %v1201
        %v1210 = vadd.f32 %v1190, %v1202
        %v1211 = vadd.f32 %v1191, %v1203
        %v1212 = vadd.f32 %v1192, %v1204
        %v1213 = vadd.f32 %v1193, %v1205
        %v1214 = vadd.f32 %v1194, %v1206
        %v1215 = vadd.f32 %v1195, %v1207
        %v1216 = vlaneseq
        %v1217 = vshrl.u32 %v1216, 7
        %v1218 = vsub.s32 3, %v1217
        %v1219 = vrot.slane %v1154, %v1218
        %v1220 = vmul.f32 %v1071, %v1219
        %v1221 = vmul.f32 %v1072, %v1219
        %v1222 = vmul.f32 %v1073, %v1219
        %v1223 = vmul.f32 %v1074, %v1219
        %v1224 = vmul.f32 %v1075, %v1219
        %v1225 = vmul.f32 %v1076, %v1219
        %v1226 = vmul.f32 %v1077, %v1219
        %v1227 = vmul.f32 %v1078, %v1219
        %v1228 = vadd.f32 %v1208, %v1220
        %v1229 = vadd.f32 %v1209, %v1221
        %v1230 = vadd.f32 %v1210, %v1222
        %v1231 = vadd.f32 %v1211, %v1223
        %v1232 = vadd.f32 %v1212, %v1224
        %v1233 = vadd.f32 %v1213, %v1225
        %v1234 = vadd.f32 %v1214, %v1226
        %v1235 = vadd.f32 %v1215, %v1227
        %v1236 = vlaneseq
        %v1237 = vshrl.u32 %v1236, 7
        %v1238 = vsub.s32 4, %v1237
        %v1239 = vrot.slane %v1154, %v1238
        %v1240 = vmul.f32 %v998, %v1239
        %v1241 = vmul.f32 %v999, %v1239
        %v1242 = vmul.f32 %v1000, %v1239
        %v1243 = vmul.f32 %v1001, %v1239
        %v1244 = vmul.f32 %v1002, %v1239
        %v1245 = vmul.f32 %v1003, %v1239
        %v1246 = vmul.f32 %v1004, %v1239
        %v1247 = vmul.f32 %v1005, %v1239
        %v1248 = vadd.f32 %v1228, %v1240
        %v1249 = vadd.f32 %v1229, %v1241
        %v1250 = vadd.f32 %v1230, %v1242
        %v1251 = vadd.f32 %v1231, %v1243
        %v1252 = vadd.f32 %v1232, %v1244
        %v1253 = vadd.f32 %v1233, %v1245
        %v1254 = vadd.f32 %v1234, %v1246
        %v1255 = vadd.f32 %v1235, %v1247
        %v1256 = vlaneseq
        %v1257 = vshrl.u32 %v1256, 7
        %v1258 = vsub.s32 5, %v1257
        %v1259 = vrot.slane %v1154, %v1258
        %v1260 = vmul.f32 %v1144, %v1259
        %v1261 = vmul.f32 %v1145, %v1259
        %v1262 = vmul.f32 %v1146, %v1259
        %v1263 = vmul.f32 %v1147, %v1259
        %v1264 = vmul.f32 %v1148, %v1259
        %v1265 = vmul.f32 %v1149, %v1259
        %v1266 = vmul.f32 %v1150, %v1259
        %v1267 = vmul.f32 %v1151, %v1259
        %v1268 = vadd.f32 %v1248, %v1260
        %v1269 = vadd.f32 %v1249, %v1261
        %v1270 = vadd.f32 %v1250, %v1262
        %v1271 = vadd.f32 %v1251, %v1263
        %v1272 = vadd.f32 %v1252, %v1264
        %v1273 = vadd.f32 %v1253, %v1265
        %v1274 = vadd.f32 %v1254, %v1266
        %v1275 = vadd.f32 %v1255, %v1267
        %v1276 = vlaneseq
        %v1277 = vshrl.u32 %v1276, 7
        %v1278 = vsub.s32 6, %v1277
        %v1279 = vrot.slane %v1154, %v1278
        %v1280 = vmul.f32 %v1073, %v1279
        %v1281 = vmul.f32 %v1074, %v1279
        %v1282 = vmul.f32 %v1075, %v1279
        %v1283 = vmul.f32 %v1076, %v1279
        %v1284 = vmul.f32 %v1077, %v1279
        %v1285 = vmul.f32 %v1078, %v1279
        %v1286 = vmul.f32 %v1079, %v1279
        %v1287 = vmul.f32 %v1080, %v1279
        %v1288 = vadd.f32 %v1268, %v1280
        %v1289 = vadd.f32 %v1269, %v1281
        %v1290 = vadd.f32 %v1270, %v1282
        %v1291 = vadd.f32 %v1271, %v1283
        %v1292 = vadd.f32 %v1272, %v1284
        %v1293 = vadd.f32 %v1273, %v1285
        %v1294 = vadd.f32 %v1274, %v1286
        %v1295 = vadd.f32 %v1275, %v1287
        %v1296 = vlaneseq
        %v1297 = vshrl.u32 %v1296, 7
        %v1298 = vsub.s32 7, %v1297
        %v1299 = vrot.slane %v1154, %v1298
        %v1300 = vmul.f32 %v1000, %v1299
        %v1301 = vmul.f32 %v1001, %v1299
        %v1302 = vmul.f32 %v1002, %v1299
        %v1303 = vmul.f32 %v1003, %v1299
        %v1304 = vmul.f32 %v1004, %v1299
        %v1305 = vmul.f32 %v1005, %v1299
        %v1306 = vmul.f32 %v1006, %v1299
        %v1307 = vmul.f32 %v1007, %v1299
        %v1308 = vadd.f32 %v1288, %v1300
        %v1309 = vadd.f32 %v1289, %v1301
        %v1310 = vadd.f32 %v1290, %v1302
        %v1311 = vadd.f32 %v1291, %v1303
        %v1312 = vadd.f32 %v1292, %v1304
        %v1313 = vadd.f32 %v1293, %v1305
        %v1314 = vadd.f32 %v1294, %v1306
        %v1315 = vadd.f32 %v1295, %v1307
        %v1316 = vlaneseq
        %v1317 = vshrl.u32 %v1316, 7
        %v1318 = vsub.s32 0, %v1317
        %v1319 = vrot.slane %v1155, %v1318
        %v1320 = vmul.f32 %v1146, %v1319
        %v1321 = vmul.f32 %v1147, %v1319
        %v1322 = vmul.f32 %v1148, %v1319
        %v1323 = vmul.f32 %v1149, %v1319
        %v1324 = vmul.f32 %v1150, %v1319
        %v1325 = vmul.f32 %v1151, %v1319
        %v1326 = vmul.f32 %v1152, %v1319
        %v1327 = vmul.f32 %v1153, %v1319
        %v1328 = vadd.f32 %v1308, %v1320
        %v1329 = vadd.f32 %v1309, %v1321
        %v1330 = vadd.f32 %v1310, %v1322
        %v1331 = vadd.f32 %v1311, %v1323
        %v1332 = vadd.f32 %v1312, %v1324
        %v1333 = vadd.f32 %v1313, %v1325
        %v1334 = vadd.f32 %v1314, %v1326
        %v1335 = vadd.f32 %v1315, %v1327
        %v1336 = vld [vmem:[%s7] sm:$0x1]
        %v1338 = vlaneseq
        %v1339 = vshrl.u32 %v1338, 7
        %v1340 = vsub.s32 0, %v1339
        %v1341 = vrot.slane %v1336, %v1340
        %v1343 = vmul.f32 %v1328, %v1341
        %v1344 = vmul.f32 %v1329, %v1341
        %v1345 = vmul.f32 %v1330, %v1341
        %v1346 = vmul.f32 %v1331, %v1341
        %v1347 = vmul.f32 %v1332, %v1341
        %v1348 = vmul.f32 %v1333, %v1341
        %v1349 = vmul.f32 %v1334, %v1341
        %v1350 = vmul.f32 %v1335, %v1341
        %v1351 = vld [vmem:[%s8] sm:$0x1]
        %v1353 = vlaneseq
        %v1354 = vshrl.u32 %v1353, 7
        %v1355 = vsub.s32 0, %v1354
        %v1356 = vrot.slane %v1351, %v1355
        %v1358 = vadd.f32 %v1343, %v1356
        %v1359 = vadd.f32 %v1344, %v1356
        %v1360 = vadd.f32 %v1345, %v1356
        %v1361 = vadd.f32 %v1346, %v1356
        %v1362 = vadd.f32 %v1347, %v1356
        %v1363 = vadd.f32 %v1348, %v1356
        %v1364 = vadd.f32 %v1349, %v1356
        %v1365 = vadd.f32 %v1350, %v1356
        %v1366 = vmax.f32 %v1358, 0.0
        %v1367 = vmax.f32 %v1359, 0.0
        %v1368 = vmax.f32 %v1360, 0.0
        %v1369 = vmax.f32 %v1361, 0.0
        %v1370 = vmax.f32 %v1362, 0.0
        %v1371 = vmax.f32 %v1363, 0.0
        %v1372 = vmax.f32 %v1364, 0.0
        %v1373 = vmax.f32 %v1365, 0.0
        %v1374 = vpack.c.bf16 %v1367, %v1366
        %v1375 = vpack.c.bf16 %v1369, %v1368
        %v1376 = vpack.c.bf16 %v1371, %v1370
        %v1377 = vpack.c.bf16 %v1373, %v1372
        %v1378 = vld [vmem:[%s9] sm:$0x3]
        %vm1379 = vcmask 31744
        %v1381 = vsel %vm1379, %v1374, 0
        %v1384 = vsel %vm1379, %v1375, 0
        %v1387 = vsel %vm1379, %v1376, 0
        %v1390 = vsel %vm1379, %v1377, 0
        %vm1392 = vcmask 1041408
        %v1394 = vsel %vm1392, %v1378, 0
        %1396 = vmatprep.subr.bf16.mxu0 0
        %1397 = vmatpush1.bf16.msra.mxu0 %v1394
        %1398 = vmatprep.subr.bf16.mxu0 0
        %1399 = vmatpush1.bf16.msra.mxu0 0
        %1400 = vmatprep.subr.bf16.mxu0 0
        %1401 = vmatpush1.bf16.msra.mxu0 0
        %1402 = vmatprep.subr.bf16.mxu0 0
        %1403 = vmatpush1.bf16.msra.mxu0 0
        %1404 = vmatprep.subr.bf16.mxu0 0
        %1405 = vmatpush1.bf16.msra.mxu0 0
        %1406 = vmatprep.subr.bf16.mxu0 0
        %1407 = vmatpush1.bf16.msra.mxu0 0
        %1408 = vmatprep.subr.bf16.mxu0 0
        %1409 = vmatpush1.bf16.msra.mxu0 0
        %1410 = vmatprep.subr.bf16.mxu0 0
        %1411 = vmatpush1.bf16.msra.mxu0 0
        %1412 = vmatprep.subr.bf16.mxu0 0
        %1413 = vmatpush1.bf16.msra.mxu0 0
        %1414 = vmatprep.subr.bf16.mxu0 0
        %1415 = vmatpush1.bf16.msra.mxu0 0
        %1416 = vmatprep.subr.bf16.mxu0 0
        %1417 = vmatpush1.bf16.msra.mxu0 0
        %1418 = vmatprep.subr.bf16.mxu0 0
        %1419 = vmatpush1.bf16.msra.mxu0 0
        %1420 = vmatprep.subr.bf16.mxu0 0
        %1421 = vmatpush1.bf16.msra.mxu0 0
        %1422 = vmatprep.subr.bf16.mxu0 0
        %1423 = vmatpush1.bf16.msra.mxu0 0
        %1424 = vmatprep.subr.bf16.mxu0 0
        %1425 = vmatpush1.bf16.msra.mxu0 0
        %1426 = vmatprep.subr.bf16.mxu0 0
        %1427 = vmatpush1.bf16.msra.mxu0 0
        %1428 = vmatprep.mubr.bf16.mxu0 0
        %1429 = vmatmul.mubr.bf16.gmra.mrb[0].mxu0 %v1381
        %v1430 = vpop.f32.mrb[0].mxu0
        %v1431 = vadd.f32 0.0, %v1430
        %v1432 = vpop.f32.mrb[0].mxu0
        %v1433 = vpop.f32.mrb[0].mxu0
        %v1434 = vadd.f32 0.0, %v1433
        %v1435 = vpop.f32.mrb[0].mxu0
        %1436 = vmatprep.mubr.bf16.mxu0 0
        %1437 = vmatmul.mubr.bf16.gmra.mrb[0].mxu0 %v1384
        %v1438 = vpop.f32.mrb[0].mxu0
        %v1439 = vadd.f32 0.0, %v1438
        %v1440 = vpop.f32.mrb[0].mxu0
        %v1441 = vpop.f32.mrb[0].mxu0
        %v1442 = vadd.f32 0.0, %v1441
        %v1443 = vpop.f32.mrb[0].mxu0
        %1444 = vmatprep.mubr.bf16.mxu0 0
        %1445 = vmatmul.mubr.bf16.gmra.mrb[0].mxu0 %v1387
        %v1446 = vpop.f32.mrb[0].mxu0
        %v1447 = vadd.f32 0.0, %v1446
        %v1448 = vpop.f32.mrb[0].mxu0
        %v1449 = vpop.f32.mrb[0].mxu0
        %v1450 = vadd.f32 0.0, %v1449
        %v1451 = vpop.f32.mrb[0].mxu0
        %1452 = vmatprep.mubr.bf16.mxu0 0
        %1453 = vmatmul.mubr.bf16.gmra.mrb[0].mxu0 %v1390
        %v1454 = vpop.f32.mrb[0].mxu0
        %v1455 = vadd.f32 0.0, %v1454
        %v1456 = vpop.f32.mrb[0].mxu0
        %v1457 = vpop.f32.mrb[0].mxu0
        %v1458 = vadd.f32 0.0, %v1457
        %v1459 = vpop.f32.mrb[0].mxu0
        %1460 = vdwg.mxu0
        %v1461 = vld [vmem:[%s10] sm:$0x1]
        %v1463 = vlaneseq
        %v1464 = vshrl.u32 %v1463, 7
        %v1465 = vsub.s32 0, %v1464
        %v1466 = vrot.slane %v1461, %v1465
        %v1468 = vmul.f32 %v1431, %v1466
        %v1469 = vmul.f32 %v1434, %v1466
        %v1470 = vmul.f32 %v1439, %v1466
        %v1471 = vmul.f32 %v1442, %v1466
        %v1472 = vmul.f32 %v1447, %v1466
        %v1473 = vmul.f32 %v1450, %v1466
        %v1474 = vmul.f32 %v1455, %v1466
        %v1475 = vmul.f32 %v1458, %v1466
        %v1476 = vld [vmem:[%s11] sm:$0x1]
        %v1478 = vlaneseq
        %v1479 = vshrl.u32 %v1478, 7
        %v1480 = vsub.s32 0, %v1479
        %v1481 = vrot.slane %v1476, %v1480
        %v1483 = vadd.f32 %v1468, %v1481
        %v1484 = vadd.f32 %v1469, %v1481
        %v1485 = vadd.f32 %v1470, %v1481
        %v1486 = vadd.f32 %v1471, %v1481
        %v1487 = vadd.f32 %v1472, %v1481
        %v1488 = vadd.f32 %v1473, %v1481
        %v1489 = vadd.f32 %v1474, %v1481
        %v1490 = vadd.f32 %v1475, %v1481
        %v1491 = vadd.f32 %v1483, %v573
        %v1492 = vadd.f32 %v1484, %v574
        %v1493 = vadd.f32 %v1485, %v575
        %v1494 = vadd.f32 %v1486, %v576
        %v1495 = vadd.f32 %v1487, %v577
        %v1496 = vadd.f32 %v1488, %v578
        %v1497 = vadd.f32 %v1489, %v579
        %v1498 = vadd.f32 %v1490, %v580
        %v1499 = vmax.f32 %v1491, 0.0
        %v1500 = vmax.f32 %v1492, 0.0
        %v1501 = vmax.f32 %v1493, 0.0
        %v1502 = vmax.f32 %v1494, 0.0
        %v1503 = vmax.f32 %v1495, 0.0
        %v1504 = vmax.f32 %v1496, 0.0
        %v1505 = vmax.f32 %v1497, 0.0
        %v1506 = vmax.f32 %v1498, 0.0
        %1507 = vst.msk [vmem:[%s559] sm:$0xff] %vm597, %v1499
        %1508 = vst.msk [vmem:[%s559 + $0x8] sm:$0xff] %vm597, %v1500
        %1509 = vst.msk [vmem:[%s559 + $0x10] sm:$0xff] %vm597, %v1501
        %1510 = vst.msk [vmem:[%s559 + $0x18] sm:$0xff] %vm597, %v1502
        %1511 = vst.msk [vmem:[%s559 + $0x20] sm:$0xff] %vm597, %v1503
        %1512 = vst.msk [vmem:[%s559 + $0x28] sm:$0xff] %vm597, %v1504
        %1513 = vst.msk [vmem:[%s559 + $0x30] sm:$0xff] %vm597, %v1505
        %1514 = vst.msk [vmem:[%s559 + $0x38] sm:$0xff] %vm597, %v1506
        %s1515 = sand.u32 %s343, 1
        %s1516 = scalar_lea.sflag [#allocation4], %s1515
        %s1517 = sand.u32 %s343, 1
        %s1518 = smul.addr %s1517, 64
        %s1519 = scalar_lea.vmem [#allocation8], %s1518
        // Predicated region
        $region81: #{tpu_custom_call.1} parent=67 // pred_check
          %p1520 = pneg %p353
        $region82: #{tpu_custom_call.1} parent=67 // pred_check_branch
          %1522 = sbr.rel (%p1520) target = $region84
        $region83: #{tpu_custom_call.1} parent=67 // pred_region
          %s1523 = smul.u32 4, %s37
          %s1525 = ssub.s32 1024, 1024
          %1526 = vsyncadd %s1516, %s1525
          %s1527 = smul.addr %s1523, 2
          %s1528 = smul.addr %s36, 32
          %s1529 = sadd.s32 %s1527, %s1528
          %s1530 = smul.addr %s1529, 128
          %s1531 = scalar_lea.hbm %s12, %s1530
          %s1532 = sshll.u32 %s1519, 4
          %s1533 = int_to_ptr.vmem [resolvable:$true] %s1532
          %1538 = dma.vmem_to_hbm [thread:$0]  %s1533, 1024, %s1531, %s1516, 128, 128, 8
        $region84: #{tpu_custom_call.1} parent=67 // pred_fallthru
          _
      $region68: #{tpu_custom_call.1} parent=5 // pred_fallthru
        _
      %p1539 = scmp.le.s32.totalorder 2, %s27
      // Predicated region
      $region85: #{tpu_custom_call.1} parent=5 // pred_check
        %p1540 = pneg %p1539
      $region86: #{tpu_custom_call.1} parent=5 // pred_check_branch
        %1542 = sbr.rel (%p1540) target = $region88
      $region87: #{tpu_custom_call.1} parent=5 // pred_region
        %s1543 = ssub.s32 %s27, 2
        // Predicated region
        $region89: #{tpu_custom_call.1} parent=87 // pred_check
          %p1544 = pneg %p359
        $region90: #{tpu_custom_call.1} parent=87 // pred_check_branch
          %1546 = sbr.rel (%p1544) target = $region92
        $region91: #{tpu_custom_call.1} parent=87 // pred_region
          %s1547 = sand.u32 %s344, 1
          %s1548 = scalar_lea.sflag [#allocation4], %s1547
          %s1549 = sand.u32 %s344, 1
          %s1550 = smul.addr %s1549, 64
          %s1551 = scalar_lea.vmem [#allocation8], %s1550
          %1552 = dma.done %s1548, 1024
        $region92: #{tpu_custom_call.1} parent=87 // pred_fallthru
          _
      $region88: #{tpu_custom_call.1} parent=5 // pred_fallthru
        _
    $region6: #{tpu_custom_call.1} parent=1 // loop_footer
      %s31 = sadd.s32 1, %s27
    $region7: #{tpu_custom_call.1} parent=1 // loop_footer_branch
      %26 = sbr.rel target = $region3
    $region8: #{tpu_custom_call.1} parent=1 // loop_exit
      _
    %1553 = vsyncpa [#allocation3], 1
    %s1554 = scalar_lea.sflag [#allocation3], 1
    %1555 = vsyncpa %s1554, 1
    %1556 = vsyncpa [#allocation6], 1
    %s1557 = scalar_lea.sflag [#allocation6], 1
    %1558 = vsyncpa %s1557, 1
    %1559 = vsyncpa [#allocation4], 1
    %s1560 = scalar_lea.sflag [#allocation4], 1
    %1561 = vsyncpa %s1560, 1

</llo_original>
